<compile_context>
chip_gen: v7x
topology: tpu7x:2x2x1
jax: 0.10.0
libtpu: 0.0.40
codegen_flags: <defaults>
</compile_context>

<pallas_src>
import numpy as np

import jax
import jax.numpy as jnp
from jax.experimental import pallas as pl
from jax.experimental.pallas import tpu as pltpu

DROPOUT_P = 0.1
BN_EPS = 1e-5
INV_KEEP = 1.0 / (1.0 - DROPOUT_P)
DROP_THRESH = np.uint32(round(DROPOUT_P * 2.0 ** 32))  # drop element iff bits < thresh

IN_F, HID, OUT_F = 28 * 28, 200, 5     # logical sizes
IN_P, HID_P, OUT_P = 896, 256, 128     # lane-dense padded sizes (multiples of 128)


def _bn_relu_dropout(h, gamma, beta, bits):
    """Training-mode BatchNorm1d -> ReLU -> inverted dropout (all f32 VPU math).

    One-pass statistics (var = E[h^2] - mean^2) applied as a single FMA, and an
    integer-threshold dropout keep-test on precomputed uint32 bits.
    """
    n = h.shape[0]
    mean = jnp.sum(h, axis=0, keepdims=True) * (1.0 / n)
    msq = jnp.sum(h * h, axis=0, keepdims=True) * (1.0 / n)
    var = jnp.maximum(msq - mean * mean, 0.0)          # biased variance (PyTorch training BN)
    scale = gamma * jax.lax.rsqrt(var + BN_EPS)
    shift = beta - mean * scale
    h = jnp.maximum(h * scale + shift, 0.0)            # BN + ReLU
    keep = bits >= DROP_THRESH
    return jnp.where(keep, h * INV_KEEP, 0.0)          # inverted dropout


def mlp_kernel(x_ref, w1_ref, w2_ref, w3_ref, w4_ref, b4_ref, bn_ref, bits_ref, o_ref):
    bn = bn_ref[...]   # (8, HID_P) f32: rows = g1, be1, g2, be2, g3, be3, pad, pad

    # Layer 1 (no bias: cancelled by BN mean subtraction)
    h = jnp.dot(x_ref[...], w1_ref[...], preferred_element_type=jnp.float32)
    h = _bn_relu_dropout(h, bn[0:1, :], bn[1:2, :], bits_ref[0])

    # Layer 2
    h = jnp.dot(h.astype(jnp.bfloat16), w2_ref[...], preferred_element_type=jnp.float32)
    h = _bn_relu_dropout(h, bn[2:3, :], bn[3:4, :], bits_ref[1])

    # Layer 3
    h = jnp.dot(h.astype(jnp.bfloat16), w3_ref[...], preferred_element_type=jnp.float32)
    h = _bn_relu_dropout(h, bn[4:5, :], bn[5:6, :], bits_ref[2])

    # Output layer (bias kept)
    out = jnp.dot(h.astype(jnp.bfloat16), w4_ref[...], preferred_element_type=jnp.float32)
    o_ref[...] = out + b4_ref[...]


@jax.jit
def mcdropout_mlp(x, key, params):
    """x: [B, 784] f32, key: PRNG key (fresh per MC sample), params: from init_params().

    BatchNorm uses full-batch statistics, so the whole batch is processed as one block
    (this also keeps semantics identical to the PyTorch training-mode forward).
    """
    w1, w2, w3, w4, b4, bn = params
    B = x.shape[0]

    # Dropout randomness: one uint32 per element per dropout layer (3 layers).
    bits = jax.random.bits(key, (3, B, HID_P), jnp.uint32)

    # Lane-dense zero-pad of the input; bf16 for the MXU operand.
    xp = jnp.pad(x, ((0, 0), (0, IN_P - IN_F))).astype(jnp.bfloat16)

    vmem = pl.BlockSpec(memory_space=pltpu.MemorySpace.VMEM)
    out = pl.pallas_call(
        mlp_kernel,
        out_shape=jax.ShapeDtypeStruct((B, OUT_P), jnp.float32),
        in_specs=[vmem] * 8,
        out_specs=vmem,
        compiler_params=pltpu.CompilerParams(
            # default scoped VMEM limit (32 MiB) is too small for large single-block
            # batches on v6e; actual use for the demo shapes is only a few hundred KB.
            vmem_limit_bytes=64 * 1024 * 1024),
    )(xp, w1, w2, w3, w4, b4, bn, bits)

    return out[:, :OUT_F]


def init_params(key):
    """nn.Linear default init (U(-1/sqrt(fan_in), +1/sqrt(fan_in))), BN gamma=1 / beta=0.

    Weights are stored pre-transposed [in, out], zero-padded to lane-dense shapes and
    cast to bf16. b1..b3 are omitted because training-mode BatchNorm cancels them.
    """
    def linear(k, fan_in, fan_out, pad_in, pad_out):
        kw, kb = jax.random.split(k)
        bound = 1.0 / float(np.sqrt(fan_in))
        w = jax.random.uniform(kw, (fan_in, fan_out), jnp.float32, -bound, bound)
        b = jax.random.uniform(kb, (fan_out,), jnp.float32, -bound, bound)
        wp = jnp.zeros((pad_in, pad_out), jnp.float32).at[:fan_in, :fan_out].set(w)
        bp = jnp.zeros((1, pad_out), jnp.float32).at[0, :fan_out].set(b)
        return wp.astype(jnp.bfloat16), bp

    k1, k2, k3, k4 = jax.random.split(key, 4)
    w1, _ = linear(k1, IN_F, HID, IN_P, HID_P)
    w2, _ = linear(k2, HID, HID, HID_P, HID_P)
    w3, _ = linear(k3, HID, HID, HID_P, HID_P)
    w4, b4 = linear(k4, HID, OUT_F, HID_P, OUT_P)

    # Packed BN affine params: rows 0,2,4 = gamma1..3 (=1), rows 1,3,5 = beta1..3 (=0).
    bn = jnp.zeros((8, HID_P), jnp.float32)
    bn = bn.at[0].set(1.0).at[2].set(1.0).at[4].set(1.0)

    return (w1, w2, w3, w4, b4, bn)


if __name__ == "__main__":
    key = jax.random.PRNGKey(0)
    kp, kx, kd = jax.random.split(key, 3)

    B = 8  # for real MC dropout, stack T samples: x_mc of shape (B*T, 784), fresh key per call
    x = jax.random.normal(kx, (B, IN_F), jnp.float32)
    params = init_params(kp)

    out = mcdropout_mlp(x, kd, params)
    out = jax.block_until_ready(out)

    assert out.shape == (B, OUT_F) and out.dtype == jnp.float32
    assert bool(jnp.all(jnp.isfinite(out)))
    print("KERNEL_OK")
</pallas_src>

<mosaic_0001>
module attributes {stable_mosaic.version = 11 : i64} {
  func.func @mlp_kernel(%arg0: memref<8x896xbf16, #tpu.memory_space<vmem>>, %arg1: memref<896x256xbf16, #tpu.memory_space<vmem>>, %arg2: memref<256x256xbf16, #tpu.memory_space<vmem>>, %arg3: memref<256x256xbf16, #tpu.memory_space<vmem>>, %arg4: memref<256x128xbf16, #tpu.memory_space<vmem>>, %arg5: memref<1x128xf32, #tpu.memory_space<vmem>>, %arg6: memref<8x256xf32, #tpu.memory_space<vmem>>, %arg7: memref<3x8x256xi32, #tpu.memory_space<vmem>>, %arg8: memref<8x128xf32, #tpu.memory_space<vmem>>) attributes {dimension_semantics = [], scalar_prefetch = 0 : i64, scratch_operands = 0 : i64, tpu.core_type = #tpu.core_type<tc>} {
    %c0 = arith.constant 0 : index
    %c0_0 = arith.constant 0 : index
    %0 = vector.load %arg6[%c0, %c0_0] : memref<8x256xf32, #tpu.memory_space<vmem>>, vector<8x256xf32>
    %c0_1 = arith.constant 0 : index
    %c0_2 = arith.constant 0 : index
    %1 = vector.load %arg0[%c0_1, %c0_2] : memref<8x896xbf16, #tpu.memory_space<vmem>>, vector<8x896xbf16>
    %c0_3 = arith.constant 0 : index
    %c0_4 = arith.constant 0 : index
    %2 = vector.load %arg1[%c0_3, %c0_4] : memref<896x256xbf16, #tpu.memory_space<vmem>>, vector<896x256xbf16>
    %cst = arith.constant dense<0.000000e+00> : vector<8x256xf32>
    %3 = tpu.matmul %1, %2, %cst {dimension_numbers = #tpu.dot_dimension_numbers<[1], [0], [0], [1], [0, 0, 1, 1], [], []>} : vector<8x896xbf16>, vector<896x256xbf16>, vector<8x256xf32> -> vector<8x256xf32>
    %4 = vector.extract_strided_slice %0 {offsets = [0, 0], sizes = [1, 256], strides = [1, 1]} : vector<8x256xf32> to vector<1x256xf32>
    %5 = vector.extract_strided_slice %0 {offsets = [1, 0], sizes = [1, 256], strides = [1, 1]} : vector<8x256xf32> to vector<1x256xf32>
    %c0_5 = arith.constant 0 : index
    %c0_6 = arith.constant 0 : index
    %c0_7 = arith.constant 0 : index
    %6 = vector.load %arg7[%c0_5, %c0_6, %c0_7] : memref<3x8x256xi32, #tpu.memory_space<vmem>>, vector<1x8x256xi32>
    %7 = vector.shape_cast %6 : vector<1x8x256xi32> to vector<8x256xi32>
    %cst_8 = arith.constant dense<0.000000e+00> : vector<256xf32>
    %8 = vector.multi_reduction <add>, %3, %cst_8 [0] : vector<8x256xf32> to vector<256xf32>
    %9 = vector.shape_cast %8 : vector<256xf32> to vector<1x256xf32>
    %cst_9 = arith.constant 1.250000e-01 : f32
    %10 = vector.broadcast %cst_9 : f32 to vector<1x256xf32>
    %11 = arith.mulf %9, %10 : vector<1x256xf32>
    %12 = arith.mulf %3, %3 : vector<8x256xf32>
    %cst_10 = arith.constant dense<0.000000e+00> : vector<256xf32>
    %13 = vector.multi_reduction <add>, %12, %cst_10 [0] : vector<8x256xf32> to vector<256xf32>
    %14 = vector.shape_cast %13 : vector<256xf32> to vector<1x256xf32>
    %cst_11 = arith.constant 1.250000e-01 : f32
    %15 = vector.broadcast %cst_11 : f32 to vector<1x256xf32>
    %16 = arith.mulf %14, %15 : vector<1x256xf32>
    %17 = arith.mulf %11, %11 : vector<1x256xf32>
    %18 = arith.subf %16, %17 : vector<1x256xf32>
    %cst_12 = arith.constant 0.000000e+00 : f32
    %19 = vector.broadcast %cst_12 : f32 to vector<1x256xf32>
    %20 = arith.maximumf %18, %19 : vector<1x256xf32>
    %cst_13 = arith.constant 9.99999974E-6 : f32
    %21 = vector.broadcast %cst_13 : f32 to vector<1x256xf32>
    %22 = arith.addf %20, %21 : vector<1x256xf32>
    %23 = math.rsqrt %22 : vector<1x256xf32>
    %24 = arith.mulf %4, %23 : vector<1x256xf32>
    %25 = arith.mulf %11, %24 : vector<1x256xf32>
    %26 = arith.subf %5, %25 : vector<1x256xf32>
    %27 = vector.broadcast %24 : vector<1x256xf32> to vector<8x256xf32>
    %28 = arith.mulf %3, %27 : vector<8x256xf32>
    %29 = vector.broadcast %26 : vector<1x256xf32> to vector<8x256xf32>
    %30 = arith.addf %28, %29 : vector<8x256xf32>
    %cst_14 = arith.constant 0.000000e+00 : f32
    %31 = vector.broadcast %cst_14 : f32 to vector<8x256xf32>
    %32 = arith.maximumf %30, %31 : vector<8x256xf32>
    %c429496730_i32 = arith.constant 429496730 : i32
    %33 = vector.broadcast %c429496730_i32 : i32 to vector<8x256xi32>
    %34 = arith.cmpi uge, %7, %33 : vector<8x256xi32>
    %cst_15 = arith.constant 1.11111116 : f32
    %35 = vector.broadcast %cst_15 : f32 to vector<8x256xf32>
    %36 = arith.mulf %32, %35 : vector<8x256xf32>
    %cst_16 = arith.constant 0.000000e+00 : f32
    %37 = vector.broadcast %cst_16 : f32 to vector<8x256xf32>
    %38 = arith.select %34, %36, %37 : vector<8x256xi1>, vector<8x256xf32>
    %39 = arith.truncf %38 : vector<8x256xf32> to vector<8x256xbf16>
    %c0_17 = arith.constant 0 : index
    %c0_18 = arith.constant 0 : index
    %40 = vector.load %arg2[%c0_17, %c0_18] : memref<256x256xbf16, #tpu.memory_space<vmem>>, vector<256x256xbf16>
    %cst_19 = arith.constant dense<0.000000e+00> : vector<8x256xf32>
    %41 = tpu.matmul %39, %40, %cst_19 {dimension_numbers = #tpu.dot_dimension_numbers<[1], [0], [0], [1], [0, 0, 1, 1], [], []>} : vector<8x256xbf16>, vector<256x256xbf16>, vector<8x256xf32> -> vector<8x256xf32>
    %42 = vector.extract_strided_slice %0 {offsets = [2, 0], sizes = [1, 256], strides = [1, 1]} : vector<8x256xf32> to vector<1x256xf32>
    %43 = vector.extract_strided_slice %0 {offsets = [3, 0], sizes = [1, 256], strides = [1, 1]} : vector<8x256xf32> to vector<1x256xf32>
    %c1 = arith.constant 1 : index
    %c0_20 = arith.constant 0 : index
    %c0_21 = arith.constant 0 : index
    %44 = vector.load %arg7[%c1, %c0_20, %c0_21] : memref<3x8x256xi32, #tpu.memory_space<vmem>>, vector<1x8x256xi32>
    %45 = vector.shape_cast %44 : vector<1x8x256xi32> to vector<8x256xi32>
    %cst_22 = arith.constant dense<0.000000e+00> : vector<256xf32>
    %46 = vector.multi_reduction <add>, %41, %cst_22 [0] : vector<8x256xf32> to vector<256xf32>
    %47 = vector.shape_cast %46 : vector<256xf32> to vector<1x256xf32>
    %cst_23 = arith.constant 1.250000e-01 : f32
    %48 = vector.broadcast %cst_23 : f32 to vector<1x256xf32>
    %49 = arith.mulf %47, %48 : vector<1x256xf32>
    %50 = arith.mulf %41, %41 : vector<8x256xf32>
    %cst_24 = arith.constant dense<0.000000e+00> : vector<256xf32>
    %51 = vector.multi_reduction <add>, %50, %cst_24 [0] : vector<8x256xf32> to vector<256xf32>
    %52 = vector.shape_cast %51 : vector<256xf32> to vector<1x256xf32>
    %cst_25 = arith.constant 1.250000e-01 : f32
    %53 = vector.broadcast %cst_25 : f32 to vector<1x256xf32>
    %54 = arith.mulf %52, %53 : vector<1x256xf32>
    %55 = arith.mulf %49, %49 : vector<1x256xf32>
    %56 = arith.subf %54, %55 : vector<1x256xf32>
    %cst_26 = arith.constant 0.000000e+00 : f32
    %57 = vector.broadcast %cst_26 : f32 to vector<1x256xf32>
    %58 = arith.maximumf %56, %57 : vector<1x256xf32>
    %cst_27 = arith.constant 9.99999974E-6 : f32
    %59 = vector.broadcast %cst_27 : f32 to vector<1x256xf32>
    %60 = arith.addf %58, %59 : vector<1x256xf32>
    %61 = math.rsqrt %60 : vector<1x256xf32>
    %62 = arith.mulf %42, %61 : vector<1x256xf32>
    %63 = arith.mulf %49, %62 : vector<1x256xf32>
    %64 = arith.subf %43, %63 : vector<1x256xf32>
    %65 = vector.broadcast %62 : vector<1x256xf32> to vector<8x256xf32>
    %66 = arith.mulf %41, %65 : vector<8x256xf32>
    %67 = vector.broadcast %64 : vector<1x256xf32> to vector<8x256xf32>
    %68 = arith.addf %66, %67 : vector<8x256xf32>
    %cst_28 = arith.constant 0.000000e+00 : f32
    %69 = vector.broadcast %cst_28 : f32 to vector<8x256xf32>
    %70 = arith.maximumf %68, %69 : vector<8x256xf32>
    %c429496730_i32_29 = arith.constant 429496730 : i32
    %71 = vector.broadcast %c429496730_i32_29 : i32 to vector<8x256xi32>
    %72 = arith.cmpi uge, %45, %71 : vector<8x256xi32>
    %cst_30 = arith.constant 1.11111116 : f32
    %73 = vector.broadcast %cst_30 : f32 to vector<8x256xf32>
    %74 = arith.mulf %70, %73 : vector<8x256xf32>
    %cst_31 = arith.constant 0.000000e+00 : f32
    %75 = vector.broadcast %cst_31 : f32 to vector<8x256xf32>
    %76 = arith.select %72, %74, %75 : vector<8x256xi1>, vector<8x256xf32>
    %77 = arith.truncf %76 : vector<8x256xf32> to vector<8x256xbf16>
    %c0_32 = arith.constant 0 : index
    %c0_33 = arith.constant 0 : index
    %78 = vector.load %arg3[%c0_32, %c0_33] : memref<256x256xbf16, #tpu.memory_space<vmem>>, vector<256x256xbf16>
    %cst_34 = arith.constant dense<0.000000e+00> : vector<8x256xf32>
    %79 = tpu.matmul %77, %78, %cst_34 {dimension_numbers = #tpu.dot_dimension_numbers<[1], [0], [0], [1], [0, 0, 1, 1], [], []>} : vector<8x256xbf16>, vector<256x256xbf16>, vector<8x256xf32> -> vector<8x256xf32>
    %80 = vector.extract_strided_slice %0 {offsets = [4, 0], sizes = [1, 256], strides = [1, 1]} : vector<8x256xf32> to vector<1x256xf32>
    %81 = vector.extract_strided_slice %0 {offsets = [5, 0], sizes = [1, 256], strides = [1, 1]} : vector<8x256xf32> to vector<1x256xf32>
    %c2 = arith.constant 2 : index
    %c0_35 = arith.constant 0 : index
    %c0_36 = arith.constant 0 : index
    %82 = vector.load %arg7[%c2, %c0_35, %c0_36] : memref<3x8x256xi32, #tpu.memory_space<vmem>>, vector<1x8x256xi32>
    %83 = vector.shape_cast %82 : vector<1x8x256xi32> to vector<8x256xi32>
    %cst_37 = arith.constant dense<0.000000e+00> : vector<256xf32>
    %84 = vector.multi_reduction <add>, %79, %cst_37 [0] : vector<8x256xf32> to vector<256xf32>
    %85 = vector.shape_cast %84 : vector<256xf32> to vector<1x256xf32>
    %cst_38 = arith.constant 1.250000e-01 : f32
    %86 = vector.broadcast %cst_38 : f32 to vector<1x256xf32>
    %87 = arith.mulf %85, %86 : vector<1x256xf32>
    %88 = arith.mulf %79, %79 : vector<8x256xf32>
    %cst_39 = arith.constant dense<0.000000e+00> : vector<256xf32>
    %89 = vector.multi_reduction <add>, %88, %cst_39 [0] : vector<8x256xf32> to vector<256xf32>
    %90 = vector.shape_cast %89 : vector<256xf32> to vector<1x256xf32>
    %cst_40 = arith.constant 1.250000e-01 : f32
    %91 = vector.broadcast %cst_40 : f32 to vector<1x256xf32>
    %92 = arith.mulf %90, %91 : vector<1x256xf32>
    %93 = arith.mulf %87, %87 : vector<1x256xf32>
    %94 = arith.subf %92, %93 : vector<1x256xf32>
    %cst_41 = arith.constant 0.000000e+00 : f32
    %95 = vector.broadcast %cst_41 : f32 to vector<1x256xf32>
    %96 = arith.maximumf %94, %95 : vector<1x256xf32>
    %cst_42 = arith.constant 9.99999974E-6 : f32
    %97 = vector.broadcast %cst_42 : f32 to vector<1x256xf32>
    %98 = arith.addf %96, %97 : vector<1x256xf32>
    %99 = math.rsqrt %98 : vector<1x256xf32>
    %100 = arith.mulf %80, %99 : vector<1x256xf32>
    %101 = arith.mulf %87, %100 : vector<1x256xf32>
    %102 = arith.subf %81, %101 : vector<1x256xf32>
    %103 = vector.broadcast %100 : vector<1x256xf32> to vector<8x256xf32>
    %104 = arith.mulf %79, %103 : vector<8x256xf32>
    %105 = vector.broadcast %102 : vector<1x256xf32> to vector<8x256xf32>
    %106 = arith.addf %104, %105 : vector<8x256xf32>
    %cst_43 = arith.constant 0.000000e+00 : f32
    %107 = vector.broadcast %cst_43 : f32 to vector<8x256xf32>
    %108 = arith.maximumf %106, %107 : vector<8x256xf32>
    %c429496730_i32_44 = arith.constant 429496730 : i32
    %109 = vector.broadcast %c429496730_i32_44 : i32 to vector<8x256xi32>
    %110 = arith.cmpi uge, %83, %109 : vector<8x256xi32>
    %cst_45 = arith.constant 1.11111116 : f32
    %111 = vector.broadcast %cst_45 : f32 to vector<8x256xf32>
    %112 = arith.mulf %108, %111 : vector<8x256xf32>
    %cst_46 = arith.constant 0.000000e+00 : f32
    %113 = vector.broadcast %cst_46 : f32 to vector<8x256xf32>
    %114 = arith.select %110, %112, %113 : vector<8x256xi1>, vector<8x256xf32>
    %115 = arith.truncf %114 : vector<8x256xf32> to vector<8x256xbf16>
    %c0_47 = arith.constant 0 : index
    %c0_48 = arith.constant 0 : index
    %116 = vector.load %arg4[%c0_47, %c0_48] : memref<256x128xbf16, #tpu.memory_space<vmem>>, vector<256x128xbf16>
    %cst_49 = arith.constant dense<0.000000e+00> : vector<8x128xf32>
    %117 = tpu.matmul %115, %116, %cst_49 {dimension_numbers = #tpu.dot_dimension_numbers<[1], [0], [0], [1], [0, 0, 1, 1], [], []>} : vector<8x256xbf16>, vector<256x128xbf16>, vector<8x128xf32> -> vector<8x128xf32>
    %c0_50 = arith.constant 0 : index
    %c0_51 = arith.constant 0 : index
    %118 = vector.load %arg5[%c0_50, %c0_51] : memref<1x128xf32, #tpu.memory_space<vmem>>, vector<1x128xf32>
    %119 = vector.broadcast %118 : vector<1x128xf32> to vector<8x128xf32>
    %120 = arith.addf %117, %119 : vector<8x128xf32>
    %c0_52 = arith.constant 0 : index
    %c0_53 = arith.constant 0 : index
    %121 = vector.load %arg8[%c0_52, %c0_53] : memref<8x128xf32, #tpu.memory_space<vmem>>, vector<8x128xf32>
    tpu.vector_store %arg8[%c0_52, %c0_53], %120 {strides = array<i32>} : memref<8x128xf32, #tpu.memory_space<vmem>>, vector<8x128xf32>,
    return
  }
}

</mosaic_0001>

<llo_original>
// kernel: mcdropout_mlp.1
$region0: #{mcdropout_mlp.1}
  #allocation0 [shape = 'u32[]', space=smem, size = 0x4, offset = 0x4, fixed_abs, tag = 'smem constant byte address 0x4 - core index']
  #allocation1 [shape = 'u32[144,128]{1,0:T(1,128)}', space=vmem, size = 0x12000, scoped, tag = 'internal scratch']
  %s0 = inlined_call_operand.hbm [shape: bf16[8,896], index: 0, kind: input, shape index: {}]
  %s1 = inlined_call_operand.hbm [shape: bf16[896,256], index: 1, kind: input, shape index: {}]
  %s2 = inlined_call_operand.hbm [shape: bf16[256,256], index: 2, kind: input, shape index: {}]
  %s3 = inlined_call_operand.hbm [shape: bf16[256,256], index: 3, kind: input, shape index: {}]
  %s4 = inlined_call_operand.hbm [shape: bf16[256,128], index: 4, kind: input, shape index: {}]
  %s5 = inlined_call_operand.hbm [shape: f32[1,128], index: 5, kind: input, shape index: {}]
  %s6 = inlined_call_operand.hbm [shape: f32[8,256], index: 6, kind: input, shape index: {}]
  %s7 = inlined_call_operand.hbm [shape: u32[3,8,256], index: 7, kind: input, shape index: {}]
  %s8 = inlined_call_operand.hbm [shape: f32[8,128], index: 8, kind: output, shape index: {}]
  %s9 = sld [smem:[#allocation0]]
  $region74: #{mcdropout_mlp.1} parent=0
    _
  %s11 = ssub.s32 1, %s9
  %s12 = scalar_select 0, %s11, %s9
  $region1: #{mcdropout_mlp.1} parent=0
    #allocation2 [shape = 'u8[14336]{0}', space=vmem, size = 0x3800, scoped, tag = 'input window, operand 0, single buffered']
    #allocation3 [shape = 's32[1]{0}', space=sflag, size = 0x4, scoped, tag = 'scoped memory for mcdropout_mlp.1']
    #allocation4 [shape = 's32[1]{0}', space=sflag, size = 0x4, scoped, tag = 'scoped memory for mcdropout_mlp.1']
    #allocation5 [shape = 'u8[458752]{0}', space=vmem, size = 0x70000, scoped, tag = 'input window, operand 1, single buffered']
    #allocation6 [shape = 's32[1]{0}', space=sflag, size = 0x4, scoped, tag = 'scoped memory for mcdropout_mlp.1']
    #allocation7 [shape = 'u8[131072]{0}', space=vmem, size = 0x20000, scoped, tag = 'input window, operand 2, single buffered']
    #allocation8 [shape = 'u8[131072]{0}', space=vmem, size = 0x20000, scoped, tag = 'input window, operand 3, single buffered']
    #allocation9 [shape = 's32[1]{0}', space=sflag, size = 0x4, scoped, tag = 'scoped memory for mcdropout_mlp.1']
    #allocation10 [shape = 'u8[65536]{0}', space=vmem, size = 0x10000, scoped, tag = 'input window, operand 4, single buffered']
    #allocation11 [shape = 'u8[512]{0}', space=vmem, size = 0x400, scoped, tag = 'input window, operand 5, single buffered']
    #allocation12 [shape = 's32[1]{0}', space=sflag, size = 0x4, scoped, tag = 'scoped memory for mcdropout_mlp.1']
    #allocation13 [shape = 'u8[8192]{0}', space=vmem, size = 0x2000, scoped, tag = 'input window, operand 6, single buffered']
    #allocation14 [shape = 'u8[24576]{0}', space=vmem, size = 0x6000, scoped, tag = 'input window, operand 7, single buffered']
    #allocation15 [shape = 's32[1]{0}', space=sflag, size = 0x4, scoped, tag = 'scoped memory for mcdropout_mlp.1']
    #allocation16 [shape = 'u8[4096]{0}', space=vmem, size = 0x1000, scoped, tag = 'output window, operand 0, single buffered']
    %13 = vsyncpa [#allocation3], 0
    %14 = vsyncpa [#allocation6], 0
    %15 = vsyncpa [#allocation9], 0
    %16 = vsyncpa [#allocation12], 0
    %17 = vsyncpa [#allocation15], 0
    %18 = vsyncpa [#allocation4], 0
    // Predicated region
    $region2: #{mcdropout_mlp.1} parent=1 // pred_check
      _
    $region3: #{mcdropout_mlp.1} parent=1 // pred_check_branch
      %20 = sbr.rel (0) target = $region5
    $region4: #{mcdropout_mlp.1} parent=1 // pred_region
      %s22 = ssub.s32 448, 448
      %23 = vsyncadd [#allocation3], %s22
      %s25 = sshll.u32 [#allocation2], 4
      %s26 = int_to_ptr.vmem [resolvable:$true] %s25
      %28 = dma.hbm_to_vmem [thread:$0]  %s0, 448, %s26, [#allocation3]
    $region5: #{mcdropout_mlp.1} parent=1 // pred_fallthru
      _
    // Predicated region
    $region6: #{mcdropout_mlp.1} parent=1 // pred_check
      _
    $region7: #{mcdropout_mlp.1} parent=1 // pred_check_branch
      %30 = sbr.rel (0) target = $region9
    $region8: #{mcdropout_mlp.1} parent=1 // pred_region
      %s32 = ssub.s32 14336, 14336
      %33 = vsyncadd [#allocation6], %s32
      %s34 = sshll.u32 [#allocation5], 4
      %s35 = int_to_ptr.vmem [resolvable:$true] %s34
      %40 = dma.hbm_to_vmem [thread:$0]  %s1, 14336, %s35, [#allocation6], 128, 128, 8
    $region9: #{mcdropout_mlp.1} parent=1 // pred_fallthru
      _
    // Predicated region
    $region10: #{mcdropout_mlp.1} parent=1 // pred_check
      _
    $region11: #{mcdropout_mlp.1} parent=1 // pred_check_branch
      %42 = sbr.rel (0) target = $region13
    $region12: #{mcdropout_mlp.1} parent=1 // pred_region
      %s44 = ssub.s32 4096, 4096
      %45 = vsyncadd [#allocation6], %s44
      %s46 = sshll.u32 [#allocation7], 4
      %s47 = int_to_ptr.vmem [resolvable:$true] %s46
      %52 = dma.hbm_to_vmem [thread:$0]  %s2, 4096, %s47, [#allocation6], 128, 128, 8
    $region13: #{mcdropout_mlp.1} parent=1 // pred_fallthru
      _
    // Predicated region
    $region14: #{mcdropout_mlp.1} parent=1 // pred_check
      _
    $region15: #{mcdropout_mlp.1} parent=1 // pred_check_branch
      %54 = sbr.rel (0) target = $region17
    $region16: #{mcdropout_mlp.1} parent=1 // pred_region
      %s56 = ssub.s32 4096, 4096
      %57 = vsyncadd [#allocation9], %s56
      %s58 = sshll.u32 [#allocation8], 4
      %s59 = int_to_ptr.vmem [resolvable:$true] %s58
      %64 = dma.hbm_to_vmem [thread:$0]  %s3, 4096, %s59, [#allocation9], 128, 128, 8
    $region17: #{mcdropout_mlp.1} parent=1 // pred_fallthru
      _
    // Predicated region
    $region18: #{mcdropout_mlp.1} parent=1 // pred_check
      _
    $region19: #{mcdropout_mlp.1} parent=1 // pred_check_branch
      %66 = sbr.rel (0) target = $region21
    $region20: #{mcdropout_mlp.1} parent=1 // pred_region
      %s68 = ssub.s32 2048, 2048
      %69 = vsyncadd [#allocation9], %s68
      %s70 = sshll.u32 [#allocation10], 4
      %s71 = int_to_ptr.vmem [resolvable:$true] %s70
      %76 = dma.hbm_to_vmem [thread:$0]  %s4, 2048, %s71, [#allocation9], 64, 64, 4
    $region21: #{mcdropout_mlp.1} parent=1 // pred_fallthru
      _
    // Predicated region
    $region22: #{mcdropout_mlp.1} parent=1 // pred_check
      _
    $region23: #{mcdropout_mlp.1} parent=1 // pred_check_branch
      %78 = sbr.rel (0) target = $region25
    $region24: #{mcdropout_mlp.1} parent=1 // pred_region
      %s80 = ssub.s32 16, 16
      %81 = vsyncadd [#allocation12], %s80
      %s83 = sshll.u32 [#allocation11], 4
      %s84 = int_to_ptr.vmem [resolvable:$true] %s83
      %86 = dma.hbm_to_vmem [thread:$0]  %s5, 16, %s84, [#allocation12]
    $region25: #{mcdropout_mlp.1} parent=1 // pred_fallthru
      _
    // Predicated region
    $region26: #{mcdropout_mlp.1} parent=1 // pred_check
      _
    $region27: #{mcdropout_mlp.1} parent=1 // pred_check_branch
      %88 = sbr.rel (0) target = $region29
    $region28: #{mcdropout_mlp.1} parent=1 // pred_region
      %s90 = ssub.s32 256, 256
      %91 = vsyncadd [#allocation12], %s90
      %s93 = sshll.u32 [#allocation13], 4
      %s94 = int_to_ptr.vmem [resolvable:$true] %s93
      %96 = dma.hbm_to_vmem [thread:$0]  %s6, 256, %s94, [#allocation12]
    $region29: #{mcdropout_mlp.1} parent=1 // pred_fallthru
      _
    // Predicated region
    $region30: #{mcdropout_mlp.1} parent=1 // pred_check
      _
    $region31: #{mcdropout_mlp.1} parent=1 // pred_check_branch
      %98 = sbr.rel (0) target = $region33
    $region32: #{mcdropout_mlp.1} parent=1 // pred_region
      %s100 = ssub.s32 768, 768
      %101 = vsyncadd [#allocation15], %s100
      %s102 = sshll.u32 [#allocation14], 4
      %s103 = int_to_ptr.vmem [resolvable:$true] %s102
      %108 = dma.hbm_to_vmem [thread:$0]  %s7, 768, %s103, [#allocation15], 256, 256, 16
    $region33: #{mcdropout_mlp.1} parent=1 // pred_fallthru
      _
    // Predicated region
    $region34: #{mcdropout_mlp.1} parent=1 // pred_check
      _
    $region35: #{mcdropout_mlp.1} parent=1 // pred_check_branch
      %110 = sbr.rel (0) target = $region37
    $region36: #{mcdropout_mlp.1} parent=1 // pred_region
      %111 = dma.done [#allocation3], 448
    $region37: #{mcdropout_mlp.1} parent=1 // pred_fallthru
      _
    // Predicated region
    $region38: #{mcdropout_mlp.1} parent=1 // pred_check
      _
    $region39: #{mcdropout_mlp.1} parent=1 // pred_check_branch
      %113 = sbr.rel (0) target = $region41
    $region40: #{mcdropout_mlp.1} parent=1 // pred_region
      %114 = dma.done [#allocation6], 14336
    $region41: #{mcdropout_mlp.1} parent=1 // pred_fallthru
      _
    // Predicated region
    $region42: #{mcdropout_mlp.1} parent=1 // pred_check
      _
    $region43: #{mcdropout_mlp.1} parent=1 // pred_check_branch
      %116 = sbr.rel (0) target = $region45
    $region44: #{mcdropout_mlp.1} parent=1 // pred_region
      %117 = dma.done [#allocation6], 4096
    $region45: #{mcdropout_mlp.1} parent=1 // pred_fallthru
      _
    // Predicated region
    $region46: #{mcdropout_mlp.1} parent=1 // pred_check
      _
    $region47: #{mcdropout_mlp.1} parent=1 // pred_check_branch
      %119 = sbr.rel (0) target = $region49
    $region48: #{mcdropout_mlp.1} parent=1 // pred_region
      %120 = dma.done [#allocation9], 4096
    $region49: #{mcdropout_mlp.1} parent=1 // pred_fallthru
      _
    // Predicated region
    $region50: #{mcdropout_mlp.1} parent=1 // pred_check
      _
    $region51: #{mcdropout_mlp.1} parent=1 // pred_check_branch
      %122 = sbr.rel (0) target = $region53
    $region52: #{mcdropout_mlp.1} parent=1 // pred_region
      %123 = dma.done [#allocation9], 2048
    $region53: #{mcdropout_mlp.1} parent=1 // pred_fallthru
      _
    // Predicated region
    $region54: #{mcdropout_mlp.1} parent=1 // pred_check
      _
    $region55: #{mcdropout_mlp.1} parent=1 // pred_check_branch
      %125 = sbr.rel (0) target = $region57
    $region56: #{mcdropout_mlp.1} parent=1 // pred_region
      %126 = dma.done [#allocation12], 16
    $region57: #{mcdropout_mlp.1} parent=1 // pred_fallthru
      _
    // Predicated region
    $region58: #{mcdropout_mlp.1} parent=1 // pred_check
      _
    $region59: #{mcdropout_mlp.1} parent=1 // pred_check_branch
      %128 = sbr.rel (0) target = $region61
    $region60: #{mcdropout_mlp.1} parent=1 // pred_region
      %129 = dma.done [#allocation12], 256
    $region61: #{mcdropout_mlp.1} parent=1 // pred_fallthru
      _
    // Predicated region
    $region62: #{mcdropout_mlp.1} parent=1 // pred_check
      _
    $region63: #{mcdropout_mlp.1} parent=1 // pred_check_branch
      %131 = sbr.rel (0) target = $region65
    $region64: #{mcdropout_mlp.1} parent=1 // pred_region
      %132 = dma.done [#allocation15], 768
    $region65: #{mcdropout_mlp.1} parent=1 // pred_fallthru
      _
    %v134 = vld [vmem:[#allocation13] sm:$0xff]
    %v135 = vld [vmem:[#allocation13 + $0x8] sm:$0xff]
    %v136 = vld [vmem:[#allocation2] sm:$0xff]
    %v137 = vld [vmem:[#allocation2 + $0x8] sm:$0xff]
    %v138 = vld [vmem:[#allocation2 + $0x10] sm:$0xff]
    %v139 = vld [vmem:[#allocation2 + $0x18] sm:$0xf]
    %v140 = vld [vmem:[#allocation5] sm:$0xff]
    %v141 = vld [vmem:[#allocation5 + $0x8] sm:$0xff]
    %v142 = vld [vmem:[#allocation5 + $0x10] sm:$0xff]
    %v143 = vld [vmem:[#allocation5 + $0x18] sm:$0xff]
    %v144 = vld [vmem:[#allocation5 + $0x20] sm:$0xff]
    %v145 = vld [vmem:[#allocation5 + $0x28] sm:$0xff]
    %v146 = vld [vmem:[#allocation5 + $0x30] sm:$0xff]
    %v147 = vld [vmem:[#allocation5 + $0x38] sm:$0xff]
    %v148 = vld [vmem:[#allocation5 + $0x40] sm:$0xff]
    %v149 = vld [vmem:[#allocation5 + $0x48] sm:$0xff]
    %v150 = vld [vmem:[#allocation5 + $0x50] sm:$0xff]
    %v151 = vld [vmem:[#allocation5 + $0x58] sm:$0xff]
    %v152 = vld [vmem:[#allocation5 + $0x60] sm:$0xff]
    %v153 = vld [vmem:[#allocation5 + $0x68] sm:$0xff]
    %v154 = vld [vmem:[#allocation5 + $0x70] sm:$0xff]
    %v155 = vld [vmem:[#allocation5 + $0x78] sm:$0xff]
    %v156 = vld [vmem:[#allocation5 + $0x80] sm:$0xff]
    %v157 = vld [vmem:[#allocation5 + $0x88] sm:$0xff]
    %v158 = vld [vmem:[#allocation5 + $0x90] sm:$0xff]
    %v159 = vld [vmem:[#allocation5 + $0x98] sm:$0xff]
    %v160 = vld [vmem:[#allocation5 + $0xa0] sm:$0xff]
    %v161 = vld [vmem:[#allocation5 + $0xa8] sm:$0xff]
    %v162 = vld [vmem:[#allocation5 + $0xb0] sm:$0xff]
    %v163 = vld [vmem:[#allocation5 + $0xb8] sm:$0xff]
    %v164 = vld [vmem:[#allocation5 + $0xc0] sm:$0xff]
    %v165 = vld [vmem:[#allocation5 + $0xc8] sm:$0xff]
    %v166 = vld [vmem:[#allocation5 + $0xd0] sm:$0xff]
    %v167 = vld [vmem:[#allocation5 + $0xd8] sm:$0xff]
    %v168 = vld [vmem:[#allocation5 + $0xe0] sm:$0xff]
    %v169 = vld [vmem:[#allocation5 + $0xe8] sm:$0xff]
    %v170 = vld [vmem:[#allocation5 + $0xf0] sm:$0xff]
    %v171 = vld [vmem:[#allocation5 + $0xf8] sm:$0xff]
    %v172 = vld [vmem:[#allocation5 + $0x100] sm:$0xff]
    %v173 = vld [vmem:[#allocation5 + $0x108] sm:$0xff]
    %v174 = vld [vmem:[#allocation5 + $0x110] sm:$0xff]
    %v175 = vld [vmem:[#allocation5 + $0x118] sm:$0xff]
    %v176 = vld [vmem:[#allocation5 + $0x120] sm:$0xff]
    %v177 = vld [vmem:[#allocation5 + $0x128] sm:$0xff]
    %v178 = vld [vmem:[#allocation5 + $0x130] sm:$0xff]
    %v179 = vld [vmem:[#allocation5 + $0x138] sm:$0xff]
    %v180 = vld [vmem:[#allocation5 + $0x140] sm:$0xff]
    %v181 = vld [vmem:[#allocation5 + $0x148] sm:$0xff]
    %v182 = vld [vmem:[#allocation5 + $0x150] sm:$0xff]
    %v183 = vld [vmem:[#allocation5 + $0x158] sm:$0xff]
    %v184 = vld [vmem:[#allocation5 + $0x160] sm:$0xff]
    %v185 = vld [vmem:[#allocation5 + $0x168] sm:$0xff]
    %v186 = vld [vmem:[#allocation5 + $0x170] sm:$0xff]
    %v187 = vld [vmem:[#allocation5 + $0x178] sm:$0xff]
    %v188 = vld [vmem:[#allocation5 + $0x180] sm:$0xff]
    %v189 = vld [vmem:[#allocation5 + $0x188] sm:$0xff]
    %v190 = vld [vmem:[#allocation5 + $0x190] sm:$0xff]
    %v191 = vld [vmem:[#allocation5 + $0x198] sm:$0xff]
    %v192 = vld [vmem:[#allocation5 + $0x1a0] sm:$0xff]
    %v193 = vld [vmem:[#allocation5 + $0x1a8] sm:$0xff]
    %v194 = vld [vmem:[#allocation5 + $0x1b0] sm:$0xff]
    %v195 = vld [vmem:[#allocation5 + $0x1b8] sm:$0xff]
    %v196 = vld [vmem:[#allocation5 + $0x1c0] sm:$0xff]
    %v197 = vld [vmem:[#allocation5 + $0x1c8] sm:$0xff]
    %v198 = vld [vmem:[#allocation5 + $0x1d0] sm:$0xff]
    %v199 = vld [vmem:[#allocation5 + $0x1d8] sm:$0xff]
    %v200 = vld [vmem:[#allocation5 + $0x1e0] sm:$0xff]
    %v201 = vld [vmem:[#allocation5 + $0x1e8] sm:$0xff]
    %v202 = vld [vmem:[#allocation5 + $0x1f0] sm:$0xff]
    %v203 = vld [vmem:[#allocation5 + $0x1f8] sm:$0xff]
    %v204 = vld [vmem:[#allocation5 + $0x200] sm:$0xff]
    %v205 = vld [vmem:[#allocation5 + $0x208] sm:$0xff]
    %v206 = vld [vmem:[#allocation5 + $0x210] sm:$0xff]
    %v207 = vld [vmem:[#allocation5 + $0x218] sm:$0xff]
    %v208 = vld [vmem:[#allocation5 + $0x220] sm:$0xff]
    %v209 = vld [vmem:[#allocation5 + $0x228] sm:$0xff]
    %v210 = vld [vmem:[#allocation5 + $0x230] sm:$0xff]
    %v211 = vld [vmem:[#allocation5 + $0x238] sm:$0xff]
    %v212 = vld [vmem:[#allocation5 + $0x240] sm:$0xff]
    %v213 = vld [vmem:[#allocation5 + $0x248] sm:$0xff]
    %v214 = vld [vmem:[#allocation5 + $0x250] sm:$0xff]
    %v215 = vld [vmem:[#allocation5 + $0x258] sm:$0xff]
    %v216 = vld [vmem:[#allocation5 + $0x260] sm:$0xff]
    %v217 = vld [vmem:[#allocation5 + $0x268] sm:$0xff]
    %v218 = vld [vmem:[#allocation5 + $0x270] sm:$0xff]
    %v219 = vld [vmem:[#allocation5 + $0x278] sm:$0xff]
    %v220 = vld [vmem:[#allocation5 + $0x280] sm:$0xff]
    %v221 = vld [vmem:[#allocation5 + $0x288] sm:$0xff]
    %v222 = vld [vmem:[#allocation5 + $0x290] sm:$0xff]
    %v223 = vld [vmem:[#allocation5 + $0x298] sm:$0xff]
    %v224 = vld [vmem:[#allocation5 + $0x2a0] sm:$0xff]
    %v225 = vld [vmem:[#allocation5 + $0x2a8] sm:$0xff]
    %v226 = vld [vmem:[#allocation5 + $0x2b0] sm:$0xff]
    %v227 = vld [vmem:[#allocation5 + $0x2b8] sm:$0xff]
    %v228 = vld [vmem:[#allocation5 + $0x2c0] sm:$0xff]
    %v229 = vld [vmem:[#allocation5 + $0x2c8] sm:$0xff]
    %v230 = vld [vmem:[#allocation5 + $0x2d0] sm:$0xff]
    %v231 = vld [vmem:[#allocation5 + $0x2d8] sm:$0xff]
    %v232 = vld [vmem:[#allocation5 + $0x2e0] sm:$0xff]
    %v233 = vld [vmem:[#allocation5 + $0x2e8] sm:$0xff]
    %v234 = vld [vmem:[#allocation5 + $0x2f0] sm:$0xff]
    %v235 = vld [vmem:[#allocation5 + $0x2f8] sm:$0xff]
    %v236 = vld [vmem:[#allocation5 + $0x300] sm:$0xff]
    %v237 = vld [vmem:[#allocation5 + $0x308] sm:$0xff]
    %v238 = vld [vmem:[#allocation5 + $0x310] sm:$0xff]
    %v239 = vld [vmem:[#allocation5 + $0x318] sm:$0xff]
    %v240 = vld [vmem:[#allocation5 + $0x320] sm:$0xff]
    %v241 = vld [vmem:[#allocation5 + $0x328] sm:$0xff]
    %v242 = vld [vmem:[#allocation5 + $0x330] sm:$0xff]
    %v243 = vld [vmem:[#allocation5 + $0x338] sm:$0xff]
    %v244 = vld [vmem:[#allocation5 + $0x340] sm:$0xff]
    %v245 = vld [vmem:[#allocation5 + $0x348] sm:$0xff]
    %v246 = vld [vmem:[#allocation5 + $0x350] sm:$0xff]
    %v247 = vld [vmem:[#allocation5 + $0x358] sm:$0xff]
    %v248 = vld [vmem:[#allocation5 + $0x360] sm:$0xff]
    %v249 = vld [vmem:[#allocation5 + $0x368] sm:$0xff]
    %v250 = vld [vmem:[#allocation5 + $0x370] sm:$0xff]
    %v251 = vld [vmem:[#allocation5 + $0x378] sm:$0xff]
    %v256 = vunpack.c.l.b16 %v136
    %v257 = vunpack.c.h.b16 %v136
    %v258 = vunpack.c.l.b16 %v137
    %v259 = vunpack.c.h.b16 %v137
    %v260 = vunpack.c.l.b16 %v138
    %v261 = vunpack.c.h.b16 %v138
    %v262 = vunpack.c.l.b16 %v139
    %v263 = vpack.c.b16 %v256, %v256
    %v264 = vpack.c.b16 %v257, %v257
    %v265 = vpack.c.b16 %v258, %v258
    %v266 = vpack.c.b16 %v259, %v259
    %v267 = vpack.c.b16 %v260, %v260
    %v268 = vpack.c.b16 %v261, %v261
    %v269 = vpack.c.b16 %v262, %v262
    %v389 = vunpack.c.l.b16 %v140
    %v390 = vunpack.c.h.b16 %v140
    %v391 = vunpack.c.l.b16 %v141
    %v392 = vunpack.c.h.b16 %v141
    %v393 = vunpack.c.l.b16 %v142
    %v394 = vunpack.c.h.b16 %v142
    %v395 = vunpack.c.l.b16 %v143
    %v396 = vunpack.c.h.b16 %v143
    %v397 = vunpack.c.l.b16 %v144
    %v398 = vunpack.c.h.b16 %v144
    %v399 = vunpack.c.l.b16 %v145
    %v400 = vunpack.c.h.b16 %v145
    %v401 = vunpack.c.l.b16 %v146
    %v402 = vunpack.c.h.b16 %v146
    %v403 = vunpack.c.l.b16 %v147
    %v404 = vunpack.c.h.b16 %v147
    %v405 = vunpack.c.l.b16 %v148
    %v406 = vunpack.c.h.b16 %v148
    %v407 = vunpack.c.l.b16 %v149
    %v408 = vunpack.c.h.b16 %v149
    %v409 = vunpack.c.l.b16 %v150
    %v410 = vunpack.c.h.b16 %v150
    %v411 = vunpack.c.l.b16 %v151
    %v412 = vunpack.c.h.b16 %v151
    %v413 = vunpack.c.l.b16 %v152
    %v414 = vunpack.c.h.b16 %v152
    %v415 = vunpack.c.l.b16 %v153
    %v416 = vunpack.c.h.b16 %v153
    %v417 = vunpack.c.l.b16 %v154
    %v418 = vunpack.c.h.b16 %v154
    %v419 = vunpack.c.l.b16 %v155
    %v420 = vunpack.c.h.b16 %v155
    %v421 = vunpack.c.l.b16 %v156
    %v422 = vunpack.c.h.b16 %v156
    %v423 = vunpack.c.l.b16 %v157
    %v424 = vunpack.c.h.b16 %v157
    %v425 = vunpack.c.l.b16 %v158
    %v426 = vunpack.c.h.b16 %v158
    %v427 = vunpack.c.l.b16 %v159
    %v428 = vunpack.c.h.b16 %v159
    %v429 = vunpack.c.l.b16 %v160
    %v430 = vunpack.c.h.b16 %v160
    %v431 = vunpack.c.l.b16 %v161
    %v432 = vunpack.c.h.b16 %v161
    %v433 = vunpack.c.l.b16 %v162
    %v434 = vunpack.c.h.b16 %v162
    %v435 = vunpack.c.l.b16 %v163
    %v436 = vunpack.c.h.b16 %v163
    %v437 = vunpack.c.l.b16 %v164
    %v438 = vunpack.c.h.b16 %v164
    %v439 = vunpack.c.l.b16 %v165
    %v440 = vunpack.c.h.b16 %v165
    %v441 = vunpack.c.l.b16 %v166
    %v442 = vunpack.c.h.b16 %v166
    %v443 = vunpack.c.l.b16 %v167
    %v444 = vunpack.c.h.b16 %v167
    %v445 = vunpack.c.l.b16 %v168
    %v446 = vunpack.c.h.b16 %v168
    %v447 = vunpack.c.l.b16 %v169
    %v448 = vunpack.c.h.b16 %v169
    %v449 = vunpack.c.l.b16 %v170
    %v450 = vunpack.c.h.b16 %v170
    %v451 = vunpack.c.l.b16 %v171
    %v452 = vunpack.c.h.b16 %v171
    %v453 = vunpack.c.l.b16 %v172
    %v454 = vunpack.c.h.b16 %v172
    %v455 = vunpack.c.l.b16 %v173
    %v456 = vunpack.c.h.b16 %v173
    %v457 = vunpack.c.l.b16 %v174
    %v458 = vunpack.c.h.b16 %v174
    %v459 = vunpack.c.l.b16 %v175
    %v460 = vunpack.c.h.b16 %v175
    %v461 = vunpack.c.l.b16 %v176
    %v462 = vunpack.c.h.b16 %v176
    %v463 = vunpack.c.l.b16 %v177
    %v464 = vunpack.c.h.b16 %v177
    %v465 = vunpack.c.l.b16 %v178
    %v466 = vunpack.c.h.b16 %v178
    %v467 = vunpack.c.l.b16 %v179
    %v468 = vunpack.c.h.b16 %v179
    %v469 = vunpack.c.l.b16 %v180
    %v470 = vunpack.c.h.b16 %v180
    %v471 = vunpack.c.l.b16 %v181
    %v472 = vunpack.c.h.b16 %v181
    %v473 = vunpack.c.l.b16 %v182
    %v474 = vunpack.c.h.b16 %v182
    %v475 = vunpack.c.l.b16 %v183
    %v476 = vunpack.c.h.b16 %v183
    %v477 = vunpack.c.l.b16 %v184
    %v478 = vunpack.c.h.b16 %v184
    %v479 = vunpack.c.l.b16 %v185
    %v480 = vunpack.c.h.b16 %v185
    %v481 = vunpack.c.l.b16 %v186
    %v482 = vunpack.c.h.b16 %v186
    %v483 = vunpack.c.l.b16 %v187
    %v484 = vunpack.c.h.b16 %v187
    %v485 = vunpack.c.l.b16 %v188
    %v486 = vunpack.c.h.b16 %v188
    %v487 = vunpack.c.l.b16 %v189
    %v488 = vunpack.c.h.b16 %v189
    %v489 = vunpack.c.l.b16 %v190
    %v490 = vunpack.c.h.b16 %v190
    %v491 = vunpack.c.l.b16 %v191
    %v492 = vunpack.c.h.b16 %v191
    %v493 = vunpack.c.l.b16 %v192
    %v494 = vunpack.c.h.b16 %v192
    %v495 = vunpack.c.l.b16 %v193
    %v496 = vunpack.c.h.b16 %v193
    %v497 = vunpack.c.l.b16 %v194
    %v498 = vunpack.c.h.b16 %v194
    %v499 = vunpack.c.l.b16 %v195
    %v500 = vunpack.c.h.b16 %v195
    %v501 = vunpack.c.l.b16 %v196
    %v502 = vunpack.c.h.b16 %v196
    %v503 = vunpack.c.l.b16 %v197
    %v504 = vunpack.c.h.b16 %v197
    %v505 = vunpack.c.l.b16 %v198
    %v506 = vunpack.c.h.b16 %v198
    %v507 = vunpack.c.l.b16 %v199
    %v508 = vunpack.c.h.b16 %v199
    %v509 = vunpack.c.l.b16 %v200
    %v510 = vunpack.c.h.b16 %v200
    %v511 = vunpack.c.l.b16 %v201
    %v512 = vunpack.c.h.b16 %v201
    %v513 = vunpack.c.l.b16 %v202
    %v514 = vunpack.c.h.b16 %v202
    %v515 = vunpack.c.l.b16 %v203
    %v516 = vunpack.c.h.b16 %v203
    %v517 = vunpack.c.l.b16 %v204
    %v518 = vunpack.c.h.b16 %v204
    %v519 = vunpack.c.l.b16 %v205
    %v520 = vunpack.c.h.b16 %v205
    %v521 = vunpack.c.l.b16 %v206
    %v522 = vunpack.c.h.b16 %v206
    %v523 = vunpack.c.l.b16 %v207
    %v524 = vunpack.c.h.b16 %v207
    %v525 = vunpack.c.l.b16 %v208
    %v526 = vunpack.c.h.b16 %v208
    %v527 = vunpack.c.l.b16 %v209
    %v528 = vunpack.c.h.b16 %v209
    %v529 = vunpack.c.l.b16 %v210
    %v530 = vunpack.c.h.b16 %v210
    %v531 = vunpack.c.l.b16 %v211
    %v532 = vunpack.c.h.b16 %v211
    %v533 = vunpack.c.l.b16 %v212
    %v534 = vunpack.c.h.b16 %v212
    %v535 = vunpack.c.l.b16 %v213
    %v536 = vunpack.c.h.b16 %v213
    %v537 = vunpack.c.l.b16 %v214
    %v538 = vunpack.c.h.b16 %v214
    %v539 = vunpack.c.l.b16 %v215
    %v540 = vunpack.c.h.b16 %v215
    %v541 = vunpack.c.l.b16 %v216
    %v542 = vunpack.c.h.b16 %v216
    %v543 = vunpack.c.l.b16 %v217
    %v544 = vunpack.c.h.b16 %v217
    %v545 = vunpack.c.l.b16 %v218
    %v546 = vunpack.c.h.b16 %v218
    %v547 = vunpack.c.l.b16 %v219
    %v548 = vunpack.c.h.b16 %v219
    %v549 = vunpack.c.l.b16 %v220
    %v550 = vunpack.c.h.b16 %v220
    %v551 = vunpack.c.l.b16 %v221
    %v552 = vunpack.c.h.b16 %v221
    %v553 = vunpack.c.l.b16 %v222
    %v554 = vunpack.c.h.b16 %v222
    %v555 = vunpack.c.l.b16 %v223
    %v556 = vunpack.c.h.b16 %v223
    %v557 = vunpack.c.l.b16 %v224
    %v558 = vunpack.c.h.b16 %v224
    %v559 = vunpack.c.l.b16 %v225
    %v560 = vunpack.c.h.b16 %v225
    %v561 = vunpack.c.l.b16 %v226
    %v562 = vunpack.c.h.b16 %v226
    %v563 = vunpack.c.l.b16 %v227
    %v564 = vunpack.c.h.b16 %v227
    %v565 = vunpack.c.l.b16 %v228
    %v566 = vunpack.c.h.b16 %v228
    %v567 = vunpack.c.l.b16 %v229
    %v568 = vunpack.c.h.b16 %v229
    %v569 = vunpack.c.l.b16 %v230
    %v570 = vunpack.c.h.b16 %v230
    %v571 = vunpack.c.l.b16 %v231
    %v572 = vunpack.c.h.b16 %v231
    %v573 = vunpack.c.l.b16 %v232
    %v574 = vunpack.c.h.b16 %v232
    %v575 = vunpack.c.l.b16 %v233
    %v576 = vunpack.c.h.b16 %v233
    %v577 = vunpack.c.l.b16 %v234
    %v578 = vunpack.c.h.b16 %v234
    %v579 = vunpack.c.l.b16 %v235
    %v580 = vunpack.c.h.b16 %v235
    %v581 = vunpack.c.l.b16 %v236
    %v582 = vunpack.c.h.b16 %v236
    %v583 = vunpack.c.l.b16 %v237
    %v584 = vunpack.c.h.b16 %v237
    %v585 = vunpack.c.l.b16 %v238
    %v586 = vunpack.c.h.b16 %v238
    %v587 = vunpack.c.l.b16 %v239
    %v588 = vunpack.c.h.b16 %v239
    %v589 = vunpack.c.l.b16 %v240
    %v590 = vunpack.c.h.b16 %v240
    %v591 = vunpack.c.l.b16 %v241
    %v592 = vunpack.c.h.b16 %v241
    %v593 = vunpack.c.l.b16 %v242
    %v594 = vunpack.c.h.b16 %v242
    %v595 = vunpack.c.l.b16 %v243
    %v596 = vunpack.c.h.b16 %v243
    %v597 = vunpack.c.l.b16 %v244
    %v598 = vunpack.c.h.b16 %v244
    %v599 = vunpack.c.l.b16 %v245
    %v600 = vunpack.c.h.b16 %v245
    %v601 = vunpack.c.l.b16 %v246
    %v602 = vunpack.c.h.b16 %v246
    %v603 = vunpack.c.l.b16 %v247
    %v604 = vunpack.c.h.b16 %v247
    %v605 = vunpack.c.l.b16 %v248
    %v606 = vunpack.c.h.b16 %v248
    %v607 = vunpack.c.l.b16 %v249
    %v608 = vunpack.c.h.b16 %v249
    %v609 = vunpack.c.l.b16 %v250
    %v610 = vunpack.c.h.b16 %v250
    %v611 = vunpack.c.l.b16 %v251
    %v612 = vunpack.c.h.b16 %v251
    %v613 = vpack.c.b16 %v391, %v389
    %v614 = vpack.c.b16 %v392, %v390
    %v615 = vpack.c.b16 %v395, %v393
    %v616 = vpack.c.b16 %v396, %v394
    %v617 = vpack.c.b16 %v399, %v397
    %v618 = vpack.c.b16 %v400, %v398
    %v619 = vpack.c.b16 %v403, %v401
    %v620 = vpack.c.b16 %v404, %v402
    %v621 = vpack.c.b16 %v407, %v405
    %v622 = vpack.c.b16 %v408, %v406
    %v623 = vpack.c.b16 %v411, %v409
    %v624 = vpack.c.b16 %v412, %v410
    %v625 = vpack.c.b16 %v415, %v413
    %v626 = vpack.c.b16 %v416, %v414
    %v627 = vpack.c.b16 %v419, %v417
    %v628 = vpack.c.b16 %v420, %v418
    %v629 = vpack.c.b16 %v423, %v421
    %v630 = vpack.c.b16 %v424, %v422
    %v631 = vpack.c.b16 %v427, %v425
    %v632 = vpack.c.b16 %v428, %v426
    %v633 = vpack.c.b16 %v431, %v429
    %v634 = vpack.c.b16 %v432, %v430
    %v635 = vpack.c.b16 %v435, %v433
    %v636 = vpack.c.b16 %v436, %v434
    %v637 = vpack.c.b16 %v439, %v437
    %v638 = vpack.c.b16 %v440, %v438
    %v639 = vpack.c.b16 %v443, %v441
    %v640 = vpack.c.b16 %v444, %v442
    %v641 = vpack.c.b16 %v447, %v445
    %v642 = vpack.c.b16 %v448, %v446
    %v643 = vpack.c.b16 %v451, %v449
    %v644 = vpack.c.b16 %v452, %v450
    %v645 = vpack.c.b16 %v455, %v453
    %v646 = vpack.c.b16 %v456, %v454
    %v647 = vpack.c.b16 %v459, %v457
    %v648 = vpack.c.b16 %v460, %v458
    %v649 = vpack.c.b16 %v463, %v461
    %v650 = vpack.c.b16 %v464, %v462
    %v651 = vpack.c.b16 %v467, %v465
    %v652 = vpack.c.b16 %v468, %v466
    %v653 = vpack.c.b16 %v471, %v469
    %v654 = vpack.c.b16 %v472, %v470
    %v655 = vpack.c.b16 %v475, %v473
    %v656 = vpack.c.b16 %v476, %v474
    %v657 = vpack.c.b16 %v479, %v477
    %v658 = vpack.c.b16 %v480, %v478
    %v659 = vpack.c.b16 %v483, %v481
    %v660 = vpack.c.b16 %v484, %v482
    %v661 = vpack.c.b16 %v487, %v485
    %v662 = vpack.c.b16 %v488, %v486
    %v663 = vpack.c.b16 %v491, %v489
    %v664 = vpack.c.b16 %v492, %v490
    %v665 = vpack.c.b16 %v495, %v493
    %v666 = vpack.c.b16 %v496, %v494
    %v667 = vpack.c.b16 %v499, %v497
    %v668 = vpack.c.b16 %v500, %v498
    %v669 = vpack.c.b16 %v503, %v501
    %v670 = vpack.c.b16 %v504, %v502
    %v671 = vpack.c.b16 %v507, %v505
    %v672 = vpack.c.b16 %v508, %v506
    %v673 = vpack.c.b16 %v511, %v509
    %v674 = vpack.c.b16 %v512, %v510
    %v675 = vpack.c.b16 %v515, %v513
    %v676 = vpack.c.b16 %v516, %v514
    %v677 = vpack.c.b16 %v519, %v517
    %v678 = vpack.c.b16 %v520, %v518
    %v679 = vpack.c.b16 %v523, %v521
    %v680 = vpack.c.b16 %v524, %v522
    %v681 = vpack.c.b16 %v527, %v525
    %v682 = vpack.c.b16 %v528, %v526
    %v683 = vpack.c.b16 %v531, %v529
    %v684 = vpack.c.b16 %v532, %v530
    %v685 = vpack.c.b16 %v535, %v533
    %v686 = vpack.c.b16 %v536, %v534
    %v687 = vpack.c.b16 %v539, %v537
    %v688 = vpack.c.b16 %v540, %v538
    %v689 = vpack.c.b16 %v543, %v541
    %v690 = vpack.c.b16 %v544, %v542
    %v691 = vpack.c.b16 %v547, %v545
    %v692 = vpack.c.b16 %v548, %v546
    %v693 = vpack.c.b16 %v551, %v549
    %v694 = vpack.c.b16 %v552, %v550
    %v695 = vpack.c.b16 %v555, %v553
    %v696 = vpack.c.b16 %v556, %v554
    %v697 = vpack.c.b16 %v559, %v557
    %v698 = vpack.c.b16 %v560, %v558
    %v699 = vpack.c.b16 %v563, %v561
    %v700 = vpack.c.b16 %v564, %v562
    %v701 = vpack.c.b16 %v567, %v565
    %v702 = vpack.c.b16 %v568, %v566
    %v703 = vpack.c.b16 %v571, %v569
    %v704 = vpack.c.b16 %v572, %v570
    %v705 = vpack.c.b16 %v575, %v573
    %v706 = vpack.c.b16 %v576, %v574
    %v707 = vpack.c.b16 %v579, %v577
    %v708 = vpack.c.b16 %v580, %v578
    %v709 = vpack.c.b16 %v583, %v581
    %v710 = vpack.c.b16 %v584, %v582
    %v711 = vpack.c.b16 %v587, %v585
    %v712 = vpack.c.b16 %v588, %v586
    %v713 = vpack.c.b16 %v591, %v589
    %v714 = vpack.c.b16 %v592, %v590
    %v715 = vpack.c.b16 %v595, %v593
    %v716 = vpack.c.b16 %v596, %v594
    %v717 = vpack.c.b16 %v599, %v597
    %v718 = vpack.c.b16 %v600, %v598
    %v719 = vpack.c.b16 %v603, %v601
    %v720 = vpack.c.b16 %v604, %v602
    %v721 = vpack.c.b16 %v607, %v605
    %v722 = vpack.c.b16 %v608, %v606
    %v723 = vpack.c.b16 %v611, %v609
    %v724 = vpack.c.b16 %v612, %v610
    %837 = vmatprep.subr.bf16.mxu0 %v614
    %838 = vmatpush1.bf16.msra.mxu0 %v613
    %839 = vmatprep.subr.bf16.mxu0 %v616
    %840 = vmatpush1.bf16.msra.mxu0 %v615
    %841 = vmatprep.subr.bf16.mxu0 %v618
    %842 = vmatpush1.bf16.msra.mxu0 %v617
    %843 = vmatprep.subr.bf16.mxu0 %v620
    %844 = vmatpush1.bf16.msra.mxu0 %v619
    %845 = vmatprep.subr.bf16.mxu0 %v622
    %846 = vmatpush1.bf16.msra.mxu0 %v621
    %847 = vmatprep.subr.bf16.mxu0 %v624
    %848 = vmatpush1.bf16.msra.mxu0 %v623
    %849 = vmatprep.subr.bf16.mxu0 %v626
    %850 = vmatpush1.bf16.msra.mxu0 %v625
    %851 = vmatprep.subr.bf16.mxu0 %v628
    %852 = vmatpush1.bf16.msra.mxu0 %v627
    %853 = vmatprep.subr.bf16.mxu0 %v630
    %854 = vmatpush1.bf16.msra.mxu0 %v629
    %855 = vmatprep.subr.bf16.mxu0 %v632
    %856 = vmatpush1.bf16.msra.mxu0 %v631
    %857 = vmatprep.subr.bf16.mxu0 %v634
    %858 = vmatpush1.bf16.msra.mxu0 %v633
    %859 = vmatprep.subr.bf16.mxu0 %v636
    %860 = vmatpush1.bf16.msra.mxu0 %v635
    %861 = vmatprep.subr.bf16.mxu0 %v638
    %862 = vmatpush1.bf16.msra.mxu0 %v637
    %863 = vmatprep.subr.bf16.mxu0 %v640
    %864 = vmatpush1.bf16.msra.mxu0 %v639
    %865 = vmatprep.subr.bf16.mxu0 %v642
    %866 = vmatpush1.bf16.msra.mxu0 %v641
    %867 = vmatprep.subr.bf16.mxu0 %v644
    %868 = vmatpush1.bf16.msra.mxu0 %v643
    %869 = vmatprep.mubr.bf16.mxu0 %v264
    %870 = vmatmul.mubr.bf16.gmra.mrb[0].mxu0 %v263
    %v871 = vpop.f32.mrb[0].mxu0
    %v872 = vadd.f32 0.0, %v871
    %v873 = vpop.f32.mrb[0].mxu0
    %v874 = vadd.f32 0.0, %v873
    %v875 = vpop.f32.mrb[0].mxu0
    %v876 = vpop.f32.mrb[0].mxu0
    %877 = vdwg.mxu0
    %878 = vmatprep.subr.bf16.mxu0 %v646
    %879 = vmatpush1.bf16.msra.mxu0 %v645
    %880 = vmatprep.subr.bf16.mxu0 %v648
    %881 = vmatpush1.bf16.msra.mxu0 %v647
    %882 = vmatprep.subr.bf16.mxu0 %v650
    %883 = vmatpush1.bf16.msra.mxu0 %v649
    %884 = vmatprep.subr.bf16.mxu0 %v652
    %885 = vmatpush1.bf16.msra.mxu0 %v651
    %886 = vmatprep.subr.bf16.mxu0 %v654
    %887 = vmatpush1.bf16.msra.mxu0 %v653
    %888 = vmatprep.subr.bf16.mxu0 %v656
    %889 = vmatpush1.bf16.msra.mxu0 %v655
    %890 = vmatprep.subr.bf16.mxu0 %v658
    %891 = vmatpush1.bf16.msra.mxu0 %v657
    %892 = vmatprep.subr.bf16.mxu0 %v660
    %893 = vmatpush1.bf16.msra.mxu0 %v659
    %894 = vmatprep.subr.bf16.mxu0 %v662
    %895 = vmatpush1.bf16.msra.mxu0 %v661
    %896 = vmatprep.subr.bf16.mxu0 %v664
    %897 = vmatpush1.bf16.msra.mxu0 %v663
    %898 = vmatprep.subr.bf16.mxu0 %v666
    %899 = vmatpush1.bf16.msra.mxu0 %v665
    %900 = vmatprep.subr.bf16.mxu0 %v668
    %901 = vmatpush1.bf16.msra.mxu0 %v667
    %902 = vmatprep.subr.bf16.mxu0 %v670
    %903 = vmatpush1.bf16.msra.mxu0 %v669
    %904 = vmatprep.subr.bf16.mxu0 %v672
    %905 = vmatpush1.bf16.msra.mxu0 %v671
    %906 = vmatprep.subr.bf16.mxu0 %v674
    %907 = vmatpush1.bf16.msra.mxu0 %v673
    %908 = vmatprep.subr.bf16.mxu0 %v676
    %909 = vmatpush1.bf16.msra.mxu0 %v675
    %910 = vmatprep.mubr.bf16.mxu0 %v266
    %911 = vmatmul.mubr.bf16.gmra.mrb[0].mxu0 %v265
    %v912 = vpop.f32.mrb[0].mxu0
    %v913 = vadd.f32 %v872, %v912
    %v914 = vpop.f32.mrb[0].mxu0
    %v915 = vadd.f32 %v874, %v914
    %v916 = vpop.f32.mrb[0].mxu0
    %v917 = vpop.f32.mrb[0].mxu0
    %918 = vdwg.mxu0
    %919 = vmatprep.subr.bf16.mxu0 %v678
    %920 = vmatpush1.bf16.msra.mxu0 %v677
    %921 = vmatprep.subr.bf16.mxu0 %v680
    %922 = vmatpush1.bf16.msra.mxu0 %v679
    %923 = vmatprep.subr.bf16.mxu0 %v682
    %924 = vmatpush1.bf16.msra.mxu0 %v681
    %925 = vmatprep.subr.bf16.mxu0 %v684
    %926 = vmatpush1.bf16.msra.mxu0 %v683
    %927 = vmatprep.subr.bf16.mxu0 %v686
    %928 = vmatpush1.bf16.msra.mxu0 %v685
    %929 = vmatprep.subr.bf16.mxu0 %v688
    %930 = vmatpush1.bf16.msra.mxu0 %v687
    %931 = vmatprep.subr.bf16.mxu0 %v690
    %932 = vmatpush1.bf16.msra.mxu0 %v689
    %933 = vmatprep.subr.bf16.mxu0 %v692
    %934 = vmatpush1.bf16.msra.mxu0 %v691
    %935 = vmatprep.subr.bf16.mxu0 %v694
    %936 = vmatpush1.bf16.msra.mxu0 %v693
    %937 = vmatprep.subr.bf16.mxu0 %v696
    %938 = vmatpush1.bf16.msra.mxu0 %v695
    %939 = vmatprep.subr.bf16.mxu0 %v698
    %940 = vmatpush1.bf16.msra.mxu0 %v697
    %941 = vmatprep.subr.bf16.mxu0 %v700
    %942 = vmatpush1.bf16.msra.mxu0 %v699
    %943 = vmatprep.subr.bf16.mxu0 %v702
    %944 = vmatpush1.bf16.msra.mxu0 %v701
    %945 = vmatprep.subr.bf16.mxu0 %v704
    %946 = vmatpush1.bf16.msra.mxu0 %v703
    %947 = vmatprep.subr.bf16.mxu0 %v706
    %948 = vmatpush1.bf16.msra.mxu0 %v705
    %949 = vmatprep.subr.bf16.mxu0 %v708
    %950 = vmatpush1.bf16.msra.mxu0 %v707
    %951 = vmatprep.mubr.bf16.mxu0 %v268
    %952 = vmatmul.mubr.bf16.gmra.mrb[0].mxu0 %v267
    %v953 = vpop.f32.mrb[0].mxu0
    %v954 = vadd.f32 %v913, %v953
    %v955 = vpop.f32.mrb[0].mxu0
    %v956 = vadd.f32 %v915, %v955
    %v957 = vpop.f32.mrb[0].mxu0
    %v958 = vpop.f32.mrb[0].mxu0
    %959 = vdwg.mxu0
    %960 = vmatprep.subr.bf16.mxu0 %v710
    %961 = vmatpush1.bf16.msra.mxu0 %v709
    %962 = vmatprep.subr.bf16.mxu0 %v712
    %963 = vmatpush1.bf16.msra.mxu0 %v711
    %964 = vmatprep.subr.bf16.mxu0 %v714
    %965 = vmatpush1.bf16.msra.mxu0 %v713
    %966 = vmatprep.subr.bf16.mxu0 %v716
    %967 = vmatpush1.bf16.msra.mxu0 %v715
    %968 = vmatprep.subr.bf16.mxu0 %v718
    %969 = vmatpush1.bf16.msra.mxu0 %v717
    %970 = vmatprep.subr.bf16.mxu0 %v720
    %971 = vmatpush1.bf16.msra.mxu0 %v719
    %972 = vmatprep.subr.bf16.mxu0 %v722
    %973 = vmatpush1.bf16.msra.mxu0 %v721
    %974 = vmatprep.subr.bf16.mxu0 %v724
    %975 = vmatpush1.bf16.msra.mxu0 %v723
    %976 = vmatprep.subr.bf16.mxu0 0
    %977 = vmatpush1.bf16.msra.mxu0 0
    %978 = vmatprep.subr.bf16.mxu0 0
    %979 = vmatpush1.bf16.msra.mxu0 0
    %980 = vmatprep.subr.bf16.mxu0 0
    %981 = vmatpush1.bf16.msra.mxu0 0
    %982 = vmatprep.subr.bf16.mxu0 0
    %983 = vmatpush1.bf16.msra.mxu0 0
    %984 = vmatprep.subr.bf16.mxu0 0
    %985 = vmatpush1.bf16.msra.mxu0 0
    %986 = vmatprep.subr.bf16.mxu0 0
    %987 = vmatpush1.bf16.msra.mxu0 0
    %988 = vmatprep.subr.bf16.mxu0 0
    %989 = vmatpush1.bf16.msra.mxu0 0
    %990 = vmatprep.subr.bf16.mxu0 0
    %991 = vmatpush1.bf16.msra.mxu0 0
    %992 = vmatprep.mubr.bf16.mxu0 0
    %993 = vmatmul.mubr.bf16.gmra.mrb[0].mxu0 %v269
    %v994 = vpop.f32.mrb[0].mxu0
    %v995 = vadd.f32 %v954, %v994
    %v996 = vpop.f32.mrb[0].mxu0
    %v997 = vadd.f32 %v956, %v996
    %v998 = vpop.f32.mrb[0].mxu0
    %v999 = vpop.f32.mrb[0].mxu0
    %1000 = vdwg.mxu0
    %v1001 = vld [vmem:[#allocation14] sm:$0xff]
    %v1002 = vld [vmem:[#allocation14 + $0x8] sm:$0xff]
    %v1003 = vrot.slane %v995, 4
    %v1004 = vadd.f32 %v995, %v1003
    %v1005 = vrot.slane %v1004, 2
    %v1006 = vadd.f32 %v1004, %v1005
    %v1007 = vrot.slane %v1006, 1
    %v1008 = vadd.f32 %v1006, %v1007
    %v1009 = vrot.slane %v997, 4
    %v1010 = vadd.f32 %v997, %v1009
    %v1011 = vrot.slane %v1010, 2
    %v1012 = vadd.f32 %v1010, %v1011
    %v1013 = vrot.slane %v1012, 1
    %v1014 = vadd.f32 %v1012, %v1013
    %v1015 = vmul.f32 %v1008, 0.125
    %v1016 = vmul.f32 %v1014, 0.125
    %v1017 = vmul.f32 %v995, %v995
    %v1018 = vmul.f32 %v997, %v997
    %v1019 = vrot.slane %v1017, 4
    %v1020 = vadd.f32 %v1017, %v1019
    %v1021 = vrot.slane %v1020, 2
    %v1022 = vadd.f32 %v1020, %v1021
    %v1023 = vrot.slane %v1022, 1
    %v1024 = vadd.f32 %v1022, %v1023
    %v1025 = vrot.slane %v1018, 4
    %v1026 = vadd.f32 %v1018, %v1025
    %v1027 = vrot.slane %v1026, 2
    %v1028 = vadd.f32 %v1026, %v1027
    %v1029 = vrot.slane %v1028, 1
    %v1030 = vadd.f32 %v1028, %v1029
    %v1031 = vmul.f32 %v1024, 0.125
    %v1032 = vmul.f32 %v1030, 0.125
    %v1033 = vmul.f32 %v1015, %v1015
    %v1034 = vmul.f32 %v1016, %v1016
    %v1035 = vsub.f32 %v1031, %v1033
    %v1036 = vsub.f32 %v1032, %v1034
    %v1037 = vmax.f32 %v1035, 0.0
    %v1038 = vmax.f32 %v1036, 0.0
    %v1039 = vadd.f32 %v1037, 1e-05
    %v1040 = vadd.f32 %v1038, 1e-05
    %v1041 = vrsqrt.pop %v1039
    %v1042 = vrsqrt.pop %v1040
    %v1043 = vmul.f32 %v134, %v1041
    %v1044 = vmul.f32 %v135, %v1042
    %v1045 = vmul.f32 %v1015, %v1043
    %v1046 = vmul.f32 %v1016, %v1044
    %v1049 = vrot.slane %v1045, 7
    %v1050 = vrot.slane %v1046, 7
    %v1053 = vsub.f32 %v134, %v1049
    %v1054 = vsub.f32 %v135, %v1050
    %v1055 = vlaneseq
    %v1056 = vshrl.u32 %v1055, 7
    %v1057 = vsub.s32 0, %v1056
    %v1058 = vrot.slane %v1043, %v1057
    %v1059 = vlaneseq
    %v1060 = vshrl.u32 %v1059, 7
    %v1061 = vsub.s32 0, %v1060
    %v1062 = vrot.slane %v1044, %v1061
    %v1063 = vmul.f32 %v995, %v1058
    %v1064 = vmul.f32 %v997, %v1062
    %v1065 = vlaneseq
    %v1066 = vshrl.u32 %v1065, 7
    %v1067 = vsub.s32 1, %v1066
    %v1068 = vrot.slane %v1053, %v1067
    %v1069 = vlaneseq
    %v1070 = vshrl.u32 %v1069, 7
    %v1071 = vsub.s32 1, %v1070
    %v1072 = vrot.slane %v1054, %v1071
    %v1073 = vadd.f32 %v1063, %v1068
    %v1074 = vadd.f32 %v1064, %v1072
    %v1075 = vmax.f32 %v1073, 0.0
    %v1076 = vmax.f32 %v1074, 0.0
    %vm1077 = vcmp.ge.u32.totalorder %v1001, 429496730
    %vm1078 = vcmp.ge.u32.totalorder %v1002, 429496730
    %v1079 = vmul.f32 %v1075, 1.1111112
    %v1080 = vmul.f32 %v1076, 1.1111112
    %v1081 = vsel %vm1077, %v1079, 0.0
    %v1082 = vsel %vm1078, %v1080, 0.0
    %v1083 = vpack.c.bf16 %v1081, %v1081
    %v1084 = vpack.c.bf16 %v1082, %v1082
    %v1085 = vld [vmem:[#allocation7] sm:$0xff]
    %v1086 = vld [vmem:[#allocation7 + $0x8] sm:$0xff]
    %v1087 = vld [vmem:[#allocation7 + $0x10] sm:$0xff]
    %v1088 = vld [vmem:[#allocation7 + $0x18] sm:$0xff]
    %v1089 = vld [vmem:[#allocation7 + $0x20] sm:$0xff]
    %v1090 = vld [vmem:[#allocation7 + $0x28] sm:$0xff]
    %v1091 = vld [vmem:[#allocation7 + $0x30] sm:$0xff]
    %v1092 = vld [vmem:[#allocation7 + $0x38] sm:$0xff]
    %v1093 = vld [vmem:[#allocation7 + $0x40] sm:$0xff]
    %v1094 = vld [vmem:[#allocation7 + $0x48] sm:$0xff]
    %v1095 = vld [vmem:[#allocation7 + $0x50] sm:$0xff]
    %v1096 = vld [vmem:[#allocation7 + $0x58] sm:$0xff]
    %v1097 = vld [vmem:[#allocation7 + $0x60] sm:$0xff]
    %v1098 = vld [vmem:[#allocation7 + $0x68] sm:$0xff]
    %v1099 = vld [vmem:[#allocation7 + $0x70] sm:$0xff]
    %v1100 = vld [vmem:[#allocation7 + $0x78] sm:$0xff]
    %v1101 = vld [vmem:[#allocation7 + $0x80] sm:$0xff]
    %v1102 = vld [vmem:[#allocation7 + $0x88] sm:$0xff]
    %v1103 = vld [vmem:[#allocation7 + $0x90] sm:$0xff]
    %v1104 = vld [vmem:[#allocation7 + $0x98] sm:$0xff]
    %v1105 = vld [vmem:[#allocation7 + $0xa0] sm:$0xff]
    %v1106 = vld [vmem:[#allocation7 + $0xa8] sm:$0xff]
    %v1107 = vld [vmem:[#allocation7 + $0xb0] sm:$0xff]
    %v1108 = vld [vmem:[#allocation7 + $0xb8] sm:$0xff]
    %v1109 = vld [vmem:[#allocation7 + $0xc0] sm:$0xff]
    %v1110 = vld [vmem:[#allocation7 + $0xc8] sm:$0xff]
    %v1111 = vld [vmem:[#allocation7 + $0xd0] sm:$0xff]
    %v1112 = vld [vmem:[#allocation7 + $0xd8] sm:$0xff]
    %v1113 = vld [vmem:[#allocation7 + $0xe0] sm:$0xff]
    %v1114 = vld [vmem:[#allocation7 + $0xe8] sm:$0xff]
    %v1115 = vld [vmem:[#allocation7 + $0xf0] sm:$0xff]
    %v1116 = vld [vmem:[#allocation7 + $0xf8] sm:$0xff]
    %v1149 = vunpack.c.l.b16 %v1085
    %v1150 = vunpack.c.h.b16 %v1085
    %v1151 = vunpack.c.l.b16 %v1086
    %v1152 = vunpack.c.h.b16 %v1086
    %v1153 = vunpack.c.l.b16 %v1087
    %v1154 = vunpack.c.h.b16 %v1087
    %v1155 = vunpack.c.l.b16 %v1088
    %v1156 = vunpack.c.h.b16 %v1088
    %v1157 = vunpack.c.l.b16 %v1089
    %v1158 = vunpack.c.h.b16 %v1089
    %v1159 = vunpack.c.l.b16 %v1090
    %v1160 = vunpack.c.h.b16 %v1090
    %v1161 = vunpack.c.l.b16 %v1091
    %v1162 = vunpack.c.h.b16 %v1091
    %v1163 = vunpack.c.l.b16 %v1092
    %v1164 = vunpack.c.h.b16 %v1092
    %v1165 = vunpack.c.l.b16 %v1093
    %v1166 = vunpack.c.h.b16 %v1093
    %v1167 = vunpack.c.l.b16 %v1094
    %v1168 = vunpack.c.h.b16 %v1094
    %v1169 = vunpack.c.l.b16 %v1095
    %v1170 = vunpack.c.h.b16 %v1095
    %v1171 = vunpack.c.l.b16 %v1096
    %v1172 = vunpack.c.h.b16 %v1096
    %v1173 = vunpack.c.l.b16 %v1097
    %v1174 = vunpack.c.h.b16 %v1097
    %v1175 = vunpack.c.l.b16 %v1098
    %v1176 = vunpack.c.h.b16 %v1098
    %v1177 = vunpack.c.l.b16 %v1099
    %v1178 = vunpack.c.h.b16 %v1099
    %v1179 = vunpack.c.l.b16 %v1100
    %v1180 = vunpack.c.h.b16 %v1100
    %v1181 = vunpack.c.l.b16 %v1101
    %v1182 = vunpack.c.h.b16 %v1101
    %v1183 = vunpack.c.l.b16 %v1102
    %v1184 = vunpack.c.h.b16 %v1102
    %v1185 = vunpack.c.l.b16 %v1103
    %v1186 = vunpack.c.h.b16 %v1103
    %v1187 = vunpack.c.l.b16 %v1104
    %v1188 = vunpack.c.h.b16 %v1104
    %v1189 = vunpack.c.l.b16 %v1105
    %v1190 = vunpack.c.h.b16 %v1105
    %v1191 = vunpack.c.l.b16 %v1106
    %v1192 = vunpack.c.h.b16 %v1106
    %v1193 = vunpack.c.l.b16 %v1107
    %v1194 = vunpack.c.h.b16 %v1107
    %v1195 = vunpack.c.l.b16 %v1108
    %v1196 = vunpack.c.h.b16 %v1108
    %v1197 = vunpack.c.l.b16 %v1109
    %v1198 = vunpack.c.h.b16 %v1109
    %v1199 = vunpack.c.l.b16 %v1110
    %v1200 = vunpack.c.h.b16 %v1110
    %v1201 = vunpack.c.l.b16 %v1111
    %v1202 = vunpack.c.h.b16 %v1111
    %v1203 = vunpack.c.l.b16 %v1112
    %v1204 = vunpack.c.h.b16 %v1112
    %v1205 = vunpack.c.l.b16 %v1113
    %v1206 = vunpack.c.h.b16 %v1113
    %v1207 = vunpack.c.l.b16 %v1114
    %v1208 = vunpack.c.h.b16 %v1114
    %v1209 = vunpack.c.l.b16 %v1115
    %v1210 = vunpack.c.h.b16 %v1115
    %v1211 = vunpack.c.l.b16 %v1116
    %v1212 = vunpack.c.h.b16 %v1116
    %v1213 = vpack.c.b16 %v1151, %v1149
    %v1214 = vpack.c.b16 %v1152, %v1150
    %v1215 = vpack.c.b16 %v1155, %v1153
    %v1216 = vpack.c.b16 %v1156, %v1154
    %v1217 = vpack.c.b16 %v1159, %v1157
    %v1218 = vpack.c.b16 %v1160, %v1158
    %v1219 = vpack.c.b16 %v1163, %v1161
    %v1220 = vpack.c.b16 %v1164, %v1162
    %v1221 = vpack.c.b16 %v1167, %v1165
    %v1222 = vpack.c.b16 %v1168, %v1166
    %v1223 = vpack.c.b16 %v1171, %v1169
    %v1224 = vpack.c.b16 %v1172, %v1170
    %v1225 = vpack.c.b16 %v1175, %v1173
    %v1226 = vpack.c.b16 %v1176, %v1174
    %v1227 = vpack.c.b16 %v1179, %v1177
    %v1228 = vpack.c.b16 %v1180, %v1178
    %v1229 = vpack.c.b16 %v1183, %v1181
    %v1230 = vpack.c.b16 %v1184, %v1182
    %v1231 = vpack.c.b16 %v1187, %v1185
    %v1232 = vpack.c.b16 %v1188, %v1186
    %v1233 = vpack.c.b16 %v1191, %v1189
    %v1234 = vpack.c.b16 %v1192, %v1190
    %v1235 = vpack.c.b16 %v1195, %v1193
    %v1236 = vpack.c.b16 %v1196, %v1194
    %v1237 = vpack.c.b16 %v1199, %v1197
    %v1238 = vpack.c.b16 %v1200, %v1198
    %v1239 = vpack.c.b16 %v1203, %v1201
    %v1240 = vpack.c.b16 %v1204, %v1202
    %v1241 = vpack.c.b16 %v1207, %v1205
    %v1242 = vpack.c.b16 %v1208, %v1206
    %v1243 = vpack.c.b16 %v1211, %v1209
    %v1244 = vpack.c.b16 %v1212, %v1210
    %1277 = vmatprep.subr.bf16.mxu0 %v1214
    %1278 = vmatpush1.bf16.msra.mxu0 %v1213
    %1279 = vmatprep.subr.bf16.mxu0 %v1216
    %1280 = vmatpush1.bf16.msra.mxu0 %v1215
    %1281 = vmatprep.subr.bf16.mxu0 %v1218
    %1282 = vmatpush1.bf16.msra.mxu0 %v1217
    %1283 = vmatprep.subr.bf16.mxu0 %v1220
    %1284 = vmatpush1.bf16.msra.mxu0 %v1219
    %1285 = vmatprep.subr.bf16.mxu0 %v1222
    %1286 = vmatpush1.bf16.msra.mxu0 %v1221
    %1287 = vmatprep.subr.bf16.mxu0 %v1224
    %1288 = vmatpush1.bf16.msra.mxu0 %v1223
    %1289 = vmatprep.subr.bf16.mxu0 %v1226
    %1290 = vmatpush1.bf16.msra.mxu0 %v1225
    %1291 = vmatprep.subr.bf16.mxu0 %v1228
    %1292 = vmatpush1.bf16.msra.mxu0 %v1227
    %1293 = vmatprep.subr.bf16.mxu0 %v1230
    %1294 = vmatpush1.bf16.msra.mxu0 %v1229
    %1295 = vmatprep.subr.bf16.mxu0 %v1232
    %1296 = vmatpush1.bf16.msra.mxu0 %v1231
    %1297 = vmatprep.subr.bf16.mxu0 %v1234
    %1298 = vmatpush1.bf16.msra.mxu0 %v1233
    %1299 = vmatprep.subr.bf16.mxu0 %v1236
    %1300 = vmatpush1.bf16.msra.mxu0 %v1235
    %1301 = vmatprep.subr.bf16.mxu0 %v1238
    %1302 = vmatpush1.bf16.msra.mxu0 %v1237
    %1303 = vmatprep.subr.bf16.mxu0 %v1240
    %1304 = vmatpush1.bf16.msra.mxu0 %v1239
    %1305 = vmatprep.subr.bf16.mxu0 %v1242
    %1306 = vmatpush1.bf16.msra.mxu0 %v1241
    %1307 = vmatprep.subr.bf16.mxu0 %v1244
    %1308 = vmatpush1.bf16.msra.mxu0 %v1243
    %1309 = vmatprep.mubr.bf16.mxu0 %v1084
    %1310 = vmatmul.mubr.bf16.gmra.mrb[0].mxu0 %v1083
    %v1311 = vpop.f32.mrb[0].mxu0
    %v1312 = vadd.f32 0.0, %v1311
    %v1313 = vpop.f32.mrb[0].mxu0
    %v1314 = vadd.f32 0.0, %v1313
    %v1315 = vpop.f32.mrb[0].mxu0
    %v1316 = vpop.f32.mrb[0].mxu0
    %1317 = vdwg.mxu0
    %s1318 = scalar_lea.vmem [#allocation14], 16
    %v1319 = vld [vmem:[%s1318] sm:$0xff]
    %v1320 = vld [vmem:[%s1318 + $0x8] sm:$0xff]
    %v1321 = vrot.slane %v1312, 4
    %v1322 = vadd.f32 %v1312, %v1321
    %v1323 = vrot.slane %v1322, 2
    %v1324 = vadd.f32 %v1322, %v1323
    %v1325 = vrot.slane %v1324, 1
    %v1326 = vadd.f32 %v1324, %v1325
    %v1327 = vrot.slane %v1314, 4
    %v1328 = vadd.f32 %v1314, %v1327
    %v1329 = vrot.slane %v1328, 2
    %v1330 = vadd.f32 %v1328, %v1329
    %v1331 = vrot.slane %v1330, 1
    %v1332 = vadd.f32 %v1330, %v1331
    %v1333 = vmul.f32 %v1326, 0.125
    %v1334 = vmul.f32 %v1332, 0.125
    %v1335 = vmul.f32 %v1312, %v1312
    %v1336 = vmul.f32 %v1314, %v1314
    %v1337 = vrot.slane %v1335, 4
    %v1338 = vadd.f32 %v1335, %v1337
    %v1339 = vrot.slane %v1338, 2
    %v1340 = vadd.f32 %v1338, %v1339
    %v1341 = vrot.slane %v1340, 1
    %v1342 = vadd.f32 %v1340, %v1341
    %v1343 = vrot.slane %v1336, 4
    %v1344 = vadd.f32 %v1336, %v1343
    %v1345 = vrot.slane %v1344, 2
    %v1346 = vadd.f32 %v1344, %v1345
    %v1347 = vrot.slane %v1346, 1
    %v1348 = vadd.f32 %v1346, %v1347
    %v1349 = vmul.f32 %v1342, 0.125
    %v1350 = vmul.f32 %v1348, 0.125
    %v1351 = vmul.f32 %v1333, %v1333
    %v1352 = vmul.f32 %v1334, %v1334
    %v1353 = vsub.f32 %v1349, %v1351
    %v1354 = vsub.f32 %v1350, %v1352
    %v1355 = vmax.f32 %v1353, 0.0
    %v1356 = vmax.f32 %v1354, 0.0
    %v1357 = vadd.f32 %v1355, 1e-05
    %v1358 = vadd.f32 %v1356, 1e-05
    %v1359 = vrsqrt.pop %v1357
    %v1360 = vrsqrt.pop %v1358
    %v1361 = vmul.f32 %v134, %v1359
    %v1362 = vmul.f32 %v135, %v1360
    %v1363 = vmul.f32 %v1333, %v1361
    %v1364 = vmul.f32 %v1334, %v1362
    %v1367 = vrot.slane %v1363, 7
    %v1368 = vrot.slane %v1364, 7
    %v1371 = vsub.f32 %v134, %v1367
    %v1372 = vsub.f32 %v135, %v1368
    %v1373 = vlaneseq
    %v1374 = vshrl.u32 %v1373, 7
    %v1375 = vsub.s32 2, %v1374
    %v1376 = vrot.slane %v1361, %v1375
    %v1377 = vlaneseq
    %v1378 = vshrl.u32 %v1377, 7
    %v1379 = vsub.s32 2, %v1378
    %v1380 = vrot.slane %v1362, %v1379
    %v1381 = vmul.f32 %v1312, %v1376
    %v1382 = vmul.f32 %v1314, %v1380
    %v1383 = vlaneseq
    %v1384 = vshrl.u32 %v1383, 7
    %v1385 = vsub.s32 3, %v1384
    %v1386 = vrot.slane %v1371, %v1385
    %v1387 = vlaneseq
    %v1388 = vshrl.u32 %v1387, 7
    %v1389 = vsub.s32 3, %v1388
    %v1390 = vrot.slane %v1372, %v1389
    %v1391 = vadd.f32 %v1381, %v1386
    %v1392 = vadd.f32 %v1382, %v1390
    %v1393 = vmax.f32 %v1391, 0.0
    %v1394 = vmax.f32 %v1392, 0.0
    %vm1395 = vcmp.ge.u32.totalorder %v1319, 429496730
    %vm1396 = vcmp.ge.u32.totalorder %v1320, 429496730
    %v1397 = vmul.f32 %v1393, 1.1111112
    %v1398 = vmul.f32 %v1394, 1.1111112
    %v1399 = vsel %vm1395, %v1397, 0.0
    %v1400 = vsel %vm1396, %v1398, 0.0
    %v1401 = vpack.c.bf16 %v1399, %v1399
    %v1402 = vpack.c.bf16 %v1400, %v1400
    %v1403 = vld [vmem:[#allocation8] sm:$0xff]
    %v1404 = vld [vmem:[#allocation8 + $0x8] sm:$0xff]
    %v1405 = vld [vmem:[#allocation8 + $0x10] sm:$0xff]
    %v1406 = vld [vmem:[#allocation8 + $0x18] sm:$0xff]
    %v1407 = vld [vmem:[#allocation8 + $0x20] sm:$0xff]
    %v1408 = vld [vmem:[#allocation8 + $0x28] sm:$0xff]
    %v1409 = vld [vmem:[#allocation8 + $0x30] sm:$0xff]
    %v1410 = vld [vmem:[#allocation8 + $0x38] sm:$0xff]
    %v1411 = vld [vmem:[#allocation8 + $0x40] sm:$0xff]
    %v1412 = vld [vmem:[#allocation8 + $0x48] sm:$0xff]
    %v1413 = vld [vmem:[#allocation8 + $0x50] sm:$0xff]
    %v1414 = vld [vmem:[#allocation8 + $0x58] sm:$0xff]
    %v1415 = vld [vmem:[#allocation8 + $0x60] sm:$0xff]
    %v1416 = vld [vmem:[#allocation8 + $0x68] sm:$0xff]
    %v1417 = vld [vmem:[#allocation8 + $0x70] sm:$0xff]
    %v1418 = vld [vmem:[#allocation8 + $0x78] sm:$0xff]
    %v1419 = vld [vmem:[#allocation8 + $0x80] sm:$0xff]
    %v1420 = vld [vmem:[#allocation8 + $0x88] sm:$0xff]
    %v1421 = vld [vmem:[#allocation8 + $0x90] sm:$0xff]
    %v1422 = vld [vmem:[#allocation8 + $0x98] sm:$0xff]
    %v1423 = vld [vmem:[#allocation8 + $0xa0] sm:$0xff]
    %v1424 = vld [vmem:[#allocation8 + $0xa8] sm:$0xff]
    %v1425 = vld [vmem:[#allocation8 + $0xb0] sm:$0xff]
    %v1426 = vld [vmem:[#allocation8 + $0xb8] sm:$0xff]
    %v1427 = vld [vmem:[#allocation8 + $0xc0] sm:$0xff]
    %v1428 = vld [vmem:[#allocation8 + $0xc8] sm:$0xff]
    %v1429 = vld [vmem:[#allocation8 + $0xd0] sm:$0xff]
    %v1430 = vld [vmem:[#allocation8 + $0xd8] sm:$0xff]
    %v1431 = vld [vmem:[#allocation8 + $0xe0] sm:$0xff]
    %v1432 = vld [vmem:[#allocation8 + $0xe8] sm:$0xff]
    %v1433 = vld [vmem:[#allocation8 + $0xf0] sm:$0xff]
    %v1434 = vld [vmem:[#allocation8 + $0xf8] sm:$0xff]
    %v1467 = vunpack.c.l.b16 %v1403
    %v1468 = vunpack.c.h.b16 %v1403
    %v1469 = vunpack.c.l.b16 %v1404
    %v1470 = vunpack.c.h.b16 %v1404
    %v1471 = vunpack.c.l.b16 %v1405
    %v1472 = vunpack.c.h.b16 %v1405
    %v1473 = vunpack.c.l.b16 %v1406
    %v1474 = vunpack.c.h.b16 %v1406
    %v1475 = vunpack.c.l.b16 %v1407
    %v1476 = vunpack.c.h.b16 %v1407
    %v1477 = vunpack.c.l.b16 %v1408
    %v1478 = vunpack.c.h.b16 %v1408
    %v1479 = vunpack.c.l.b16 %v1409
    %v1480 = vunpack.c.h.b16 %v1409
    %v1481 = vunpack.c.l.b16 %v1410
    %v1482 = vunpack.c.h.b16 %v1410
    %v1483 = vunpack.c.l.b16 %v1411
    %v1484 = vunpack.c.h.b16 %v1411
    %v1485 = vunpack.c.l.b16 %v1412
    %v1486 = vunpack.c.h.b16 %v1412
    %v1487 = vunpack.c.l.b16 %v1413
    %v1488 = vunpack.c.h.b16 %v1413
    %v1489 = vunpack.c.l.b16 %v1414
    %v1490 = vunpack.c.h.b16 %v1414
    %v1491 = vunpack.c.l.b16 %v1415
    %v1492 = vunpack.c.h.b16 %v1415
    %v1493 = vunpack.c.l.b16 %v1416
    %v1494 = vunpack.c.h.b16 %v1416
    %v1495 = vunpack.c.l.b16 %v1417
    %v1496 = vunpack.c.h.b16 %v1417
    %v1497 = vunpack.c.l.b16 %v1418
    %v1498 = vunpack.c.h.b16 %v1418
    %v1499 = vunpack.c.l.b16 %v1419
    %v1500 = vunpack.c.h.b16 %v1419
    %v1501 = vunpack.c.l.b16 %v1420
    %v1502 = vunpack.c.h.b16 %v1420
    %v1503 = vunpack.c.l.b16 %v1421
    %v1504 = vunpack.c.h.b16 %v1421
    %v1505 = vunpack.c.l.b16 %v1422
    %v1506 = vunpack.c.h.b16 %v1422
    %v1507 = vunpack.c.l.b16 %v1423
    %v1508 = vunpack.c.h.b16 %v1423
    %v1509 = vunpack.c.l.b16 %v1424
    %v1510 = vunpack.c.h.b16 %v1424
    %v1511 = vunpack.c.l.b16 %v1425
    %v1512 = vunpack.c.h.b16 %v1425
    %v1513 = vunpack.c.l.b16 %v1426
    %v1514 = vunpack.c.h.b16 %v1426
    %v1515 = vunpack.c.l.b16 %v1427
    %v1516 = vunpack.c.h.b16 %v1427
    %v1517 = vunpack.c.l.b16 %v1428
    %v1518 = vunpack.c.h.b16 %v1428
    %v1519 = vunpack.c.l.b16 %v1429
    %v1520 = vunpack.c.h.b16 %v1429
    %v1521 = vunpack.c.l.b16 %v1430
    %v1522 = vunpack.c.h.b16 %v1430
    %v1523 = vunpack.c.l.b16 %v1431
    %v1524 = vunpack.c.h.b16 %v1431
    %v1525 = vunpack.c.l.b16 %v1432
    %v1526 = vunpack.c.h.b16 %v1432
    %v1527 = vunpack.c.l.b16 %v1433
    %v1528 = vunpack.c.h.b16 %v1433
    %v1529 = vunpack.c.l.b16 %v1434
    %v1530 = vunpack.c.h.b16 %v1434
    %v1531 = vpack.c.b16 %v1469, %v1467
    %v1532 = vpack.c.b16 %v1470, %v1468
    %v1533 = vpack.c.b16 %v1473, %v1471
    %v1534 = vpack.c.b16 %v1474, %v1472
    %v1535 = vpack.c.b16 %v1477, %v1475
    %v1536 = vpack.c.b16 %v1478, %v1476
    %v1537 = vpack.c.b16 %v1481, %v1479
    %v1538 = vpack.c.b16 %v1482, %v1480
    %v1539 = vpack.c.b16 %v1485, %v1483
    %v1540 = vpack.c.b16 %v1486, %v1484
    %v1541 = vpack.c.b16 %v1489, %v1487
    %v1542 = vpack.c.b16 %v1490, %v1488
    %v1543 = vpack.c.b16 %v1493, %v1491
    %v1544 = vpack.c.b16 %v1494, %v1492
    %v1545 = vpack.c.b16 %v1497, %v1495
    %v1546 = vpack.c.b16 %v1498, %v1496
    %v1547 = vpack.c.b16 %v1501, %v1499
    %v1548 = vpack.c.b16 %v1502, %v1500
    %v1549 = vpack.c.b16 %v1505, %v1503
    %v1550 = vpack.c.b16 %v1506, %v1504
    %v1551 = vpack.c.b16 %v1509, %v1507
    %v1552 = vpack.c.b16 %v1510, %v1508
    %v1553 = vpack.c.b16 %v1513, %v1511
    %v1554 = vpack.c.b16 %v1514, %v1512
    %v1555 = vpack.c.b16 %v1517, %v1515
    %v1556 = vpack.c.b16 %v1518, %v1516
    %v1557 = vpack.c.b16 %v1521, %v1519
    %v1558 = vpack.c.b16 %v1522, %v1520
    %v1559 = vpack.c.b16 %v1525, %v1523
    %v1560 = vpack.c.b16 %v1526, %v1524
    %v1561 = vpack.c.b16 %v1529, %v1527
    %v1562 = vpack.c.b16 %v1530, %v1528
    %1595 = vmatprep.subr.bf16.mxu0 %v1532
    %1596 = vmatpush1.bf16.msra.mxu0 %v1531
    %1597 = vmatprep.subr.bf16.mxu0 %v1534
    %1598 = vmatpush1.bf16.msra.mxu0 %v1533
    %1599 = vmatprep.subr.bf16.mxu0 %v1536
    %1600 = vmatpush1.bf16.msra.mxu0 %v1535
    %1601 = vmatprep.subr.bf16.mxu0 %v1538
    %1602 = vmatpush1.bf16.msra.mxu0 %v1537
    %1603 = vmatprep.subr.bf16.mxu0 %v1540
    %1604 = vmatpush1.bf16.msra.mxu0 %v1539
    %1605 = vmatprep.subr.bf16.mxu0 %v1542
    %1606 = vmatpush1.bf16.msra.mxu0 %v1541
    %1607 = vmatprep.subr.bf16.mxu0 %v1544
    %1608 = vmatpush1.bf16.msra.mxu0 %v1543
    %1609 = vmatprep.subr.bf16.mxu0 %v1546
    %1610 = vmatpush1.bf16.msra.mxu0 %v1545
    %1611 = vmatprep.subr.bf16.mxu0 %v1548
    %1612 = vmatpush1.bf16.msra.mxu0 %v1547
    %1613 = vmatprep.subr.bf16.mxu0 %v1550
    %1614 = vmatpush1.bf16.msra.mxu0 %v1549
    %1615 = vmatprep.subr.bf16.mxu0 %v1552
    %1616 = vmatpush1.bf16.msra.mxu0 %v1551
    %1617 = vmatprep.subr.bf16.mxu0 %v1554
    %1618 = vmatpush1.bf16.msra.mxu0 %v1553
    %1619 = vmatprep.subr.bf16.mxu0 %v1556
    %1620 = vmatpush1.bf16.msra.mxu0 %v1555
    %1621 = vmatprep.subr.bf16.mxu0 %v1558
    %1622 = vmatpush1.bf16.msra.mxu0 %v1557
    %1623 = vmatprep.subr.bf16.mxu0 %v1560
    %1624 = vmatpush1.bf16.msra.mxu0 %v1559
    %1625 = vmatprep.subr.bf16.mxu0 %v1562
    %1626 = vmatpush1.bf16.msra.mxu0 %v1561
    %1627 = vmatprep.mubr.bf16.mxu0 %v1402
    %1628 = vmatmul.mubr.bf16.gmra.mrb[0].mxu0 %v1401
    %v1629 = vpop.f32.mrb[0].mxu0
    %v1630 = vadd.f32 0.0, %v1629
    %v1631 = vpop.f32.mrb[0].mxu0
    %v1632 = vadd.f32 0.0, %v1631
    %v1633 = vpop.f32.mrb[0].mxu0
    %v1634 = vpop.f32.mrb[0].mxu0
    %1635 = vdwg.mxu0
    %s1636 = scalar_lea.vmem [#allocation14], 32
    %v1637 = vld [vmem:[%s1636] sm:$0xff]
    %v1638 = vld [vmem:[%s1636 + $0x8] sm:$0xff]
    %v1639 = vrot.slane %v1630, 4
    %v1640 = vadd.f32 %v1630, %v1639
    %v1641 = vrot.slane %v1640, 2
    %v1642 = vadd.f32 %v1640, %v1641
    %v1643 = vrot.slane %v1642, 1
    %v1644 = vadd.f32 %v1642, %v1643
    %v1645 = vrot.slane %v1632, 4
    %v1646 = vadd.f32 %v1632, %v1645
    %v1647 = vrot.slane %v1646, 2
    %v1648 = vadd.f32 %v1646, %v1647
    %v1649 = vrot.slane %v1648, 1
    %v1650 = vadd.f32 %v1648, %v1649
    %v1651 = vmul.f32 %v1644, 0.125
    %v1652 = vmul.f32 %v1650, 0.125
    %v1653 = vmul.f32 %v1630, %v1630
    %v1654 = vmul.f32 %v1632, %v1632
    %v1655 = vrot.slane %v1653, 4
    %v1656 = vadd.f32 %v1653, %v1655
    %v1657 = vrot.slane %v1656, 2
    %v1658 = vadd.f32 %v1656, %v1657
    %v1659 = vrot.slane %v1658, 1
    %v1660 = vadd.f32 %v1658, %v1659
    %v1661 = vrot.slane %v1654, 4
    %v1662 = vadd.f32 %v1654, %v1661
    %v1663 = vrot.slane %v1662, 2
    %v1664 = vadd.f32 %v1662, %v1663
    %v1665 = vrot.slane %v1664, 1
    %v1666 = vadd.f32 %v1664, %v1665
    %v1667 = vmul.f32 %v1660, 0.125
    %v1668 = vmul.f32 %v1666, 0.125
    %v1669 = vmul.f32 %v1651, %v1651
    %v1670 = vmul.f32 %v1652, %v1652
    %v1671 = vsub.f32 %v1667, %v1669
    %v1672 = vsub.f32 %v1668, %v1670
    %v1673 = vmax.f32 %v1671, 0.0
    %v1674 = vmax.f32 %v1672, 0.0
    %v1675 = vadd.f32 %v1673, 1e-05
    %v1676 = vadd.f32 %v1674, 1e-05
    %v1677 = vrsqrt.pop %v1675
    %v1678 = vrsqrt.pop %v1676
    %v1679 = vmul.f32 %v134, %v1677
    %v1680 = vmul.f32 %v135, %v1678
    %v1681 = vmul.f32 %v1651, %v1679
    %v1682 = vmul.f32 %v1652, %v1680
    %v1685 = vrot.slane %v1681, 7
    %v1686 = vrot.slane %v1682, 7
    %v1689 = vsub.f32 %v134, %v1685
    %v1690 = vsub.f32 %v135, %v1686
    %v1691 = vlaneseq
    %v1692 = vshrl.u32 %v1691, 7
    %v1693 = vsub.s32 4, %v1692
    %v1694 = vrot.slane %v1679, %v1693
    %v1695 = vlaneseq
    %v1696 = vshrl.u32 %v1695, 7
    %v1697 = vsub.s32 4, %v1696
    %v1698 = vrot.slane %v1680, %v1697
    %v1699 = vmul.f32 %v1630, %v1694
    %v1700 = vmul.f32 %v1632, %v1698
    %v1701 = vlaneseq
    %v1702 = vshrl.u32 %v1701, 7
    %v1703 = vsub.s32 5, %v1702
    %v1704 = vrot.slane %v1689, %v1703
    %v1705 = vlaneseq
    %v1706 = vshrl.u32 %v1705, 7
    %v1707 = vsub.s32 5, %v1706
    %v1708 = vrot.slane %v1690, %v1707
    %v1709 = vadd.f32 %v1699, %v1704
    %v1710 = vadd.f32 %v1700, %v1708
    %v1711 = vmax.f32 %v1709, 0.0
    %v1712 = vmax.f32 %v1710, 0.0
    %vm1713 = vcmp.ge.u32.totalorder %v1637, 429496730
    %vm1714 = vcmp.ge.u32.totalorder %v1638, 429496730
    %v1715 = vmul.f32 %v1711, 1.1111112
    %v1716 = vmul.f32 %v1712, 1.1111112
    %v1717 = vsel %vm1713, %v1715, 0.0
    %v1718 = vsel %vm1714, %v1716, 0.0
    %v1719 = vpack.c.bf16 %v1717, %v1717
    %v1720 = vpack.c.bf16 %v1718, %v1718
    %v1721 = vld [vmem:[#allocation10] sm:$0xf]
    %v1722 = vld [vmem:[#allocation10 + $0x4] sm:$0xf]
    %v1723 = vld [vmem:[#allocation10 + $0x8] sm:$0xf]
    %v1724 = vld [vmem:[#allocation10 + $0xc] sm:$0xf]
    %v1725 = vld [vmem:[#allocation10 + $0x10] sm:$0xf]
    %v1726 = vld [vmem:[#allocation10 + $0x14] sm:$0xf]
    %v1727 = vld [vmem:[#allocation10 + $0x18] sm:$0xf]
    %v1728 = vld [vmem:[#allocation10 + $0x1c] sm:$0xf]
    %v1729 = vld [vmem:[#allocation10 + $0x20] sm:$0xf]
    %v1730 = vld [vmem:[#allocation10 + $0x24] sm:$0xf]
    %v1731 = vld [vmem:[#allocation10 + $0x28] sm:$0xf]
    %v1732 = vld [vmem:[#allocation10 + $0x2c] sm:$0xf]
    %v1733 = vld [vmem:[#allocation10 + $0x30] sm:$0xf]
    %v1734 = vld [vmem:[#allocation10 + $0x34] sm:$0xf]
    %v1735 = vld [vmem:[#allocation10 + $0x38] sm:$0xf]
    %v1736 = vld [vmem:[#allocation10 + $0x3c] sm:$0xf]
    %v1737 = vld [vmem:[#allocation10 + $0x40] sm:$0xf]
    %v1738 = vld [vmem:[#allocation10 + $0x44] sm:$0xf]
    %v1739 = vld [vmem:[#allocation10 + $0x48] sm:$0xf]
    %v1740 = vld [vmem:[#allocation10 + $0x4c] sm:$0xf]
    %v1741 = vld [vmem:[#allocation10 + $0x50] sm:$0xf]
    %v1742 = vld [vmem:[#allocation10 + $0x54] sm:$0xf]
    %v1743 = vld [vmem:[#allocation10 + $0x58] sm:$0xf]
    %v1744 = vld [vmem:[#allocation10 + $0x5c] sm:$0xf]
    %v1745 = vld [vmem:[#allocation10 + $0x60] sm:$0xf]
    %v1746 = vld [vmem:[#allocation10 + $0x64] sm:$0xf]
    %v1747 = vld [vmem:[#allocation10 + $0x68] sm:$0xf]
    %v1748 = vld [vmem:[#allocation10 + $0x6c] sm:$0xf]
    %v1749 = vld [vmem:[#allocation10 + $0x70] sm:$0xf]
    %v1750 = vld [vmem:[#allocation10 + $0x74] sm:$0xf]
    %v1751 = vld [vmem:[#allocation10 + $0x78] sm:$0xf]
    %v1752 = vld [vmem:[#allocation10 + $0x7c] sm:$0xf]
    %v1753 = vld [vmem:[#allocation11] sm:$0x1]
    %v1755 = vlaneseq
    %v1756 = vshrl.u32 %v1755, 7
    %v1757 = vsub.s32 0, %v1756
    %v1758 = vrot.slane %v1753, %v1757
    %v1792 = vunpack.c.l.b16 %v1721
    %v1793 = vunpack.c.l.b16 %v1722
    %v1794 = vunpack.c.l.b16 %v1723
    %v1795 = vunpack.c.l.b16 %v1724
    %v1796 = vunpack.c.l.b16 %v1725
    %v1797 = vunpack.c.l.b16 %v1726
    %v1798 = vunpack.c.l.b16 %v1727
    %v1799 = vunpack.c.l.b16 %v1728
    %v1800 = vunpack.c.l.b16 %v1729
    %v1801 = vunpack.c.l.b16 %v1730
    %v1802 = vunpack.c.l.b16 %v1731
    %v1803 = vunpack.c.l.b16 %v1732
    %v1804 = vunpack.c.l.b16 %v1733
    %v1805 = vunpack.c.l.b16 %v1734
    %v1806 = vunpack.c.l.b16 %v1735
    %v1807 = vunpack.c.l.b16 %v1736
    %v1808 = vunpack.c.l.b16 %v1737
    %v1809 = vunpack.c.l.b16 %v1738
    %v1810 = vunpack.c.l.b16 %v1739
    %v1811 = vunpack.c.l.b16 %v1740
    %v1812 = vunpack.c.l.b16 %v1741
    %v1813 = vunpack.c.l.b16 %v1742
    %v1814 = vunpack.c.l.b16 %v1743
    %v1815 = vunpack.c.l.b16 %v1744
    %v1816 = vunpack.c.l.b16 %v1745
    %v1817 = vunpack.c.l.b16 %v1746
    %v1818 = vunpack.c.l.b16 %v1747
    %v1819 = vunpack.c.l.b16 %v1748
    %v1820 = vunpack.c.l.b16 %v1749
    %v1821 = vunpack.c.l.b16 %v1750
    %v1822 = vunpack.c.l.b16 %v1751
    %v1823 = vunpack.c.l.b16 %v1752
    %v1824 = vpack.c.b16 %v1793, %v1792
    %v1825 = vpack.c.b16 %v1795, %v1794
    %v1826 = vpack.c.b16 %v1797, %v1796
    %v1827 = vpack.c.b16 %v1799, %v1798
    %v1828 = vpack.c.b16 %v1801, %v1800
    %v1829 = vpack.c.b16 %v1803, %v1802
    %v1830 = vpack.c.b16 %v1805, %v1804
    %v1831 = vpack.c.b16 %v1807, %v1806
    %v1832 = vpack.c.b16 %v1809, %v1808
    %v1833 = vpack.c.b16 %v1811, %v1810
    %v1834 = vpack.c.b16 %v1813, %v1812
    %v1835 = vpack.c.b16 %v1815, %v1814
    %v1836 = vpack.c.b16 %v1817, %v1816
    %v1837 = vpack.c.b16 %v1819, %v1818
    %v1838 = vpack.c.b16 %v1821, %v1820
    %v1839 = vpack.c.b16 %v1823, %v1822
    %1856 = vmatprep.subr.bf16.mxu0 0
    %1857 = vmatpush1.bf16.msra.mxu0 %v1824
    %1858 = vmatprep.subr.bf16.mxu0 0
    %1859 = vmatpush1.bf16.msra.mxu0 %v1825
    %1860 = vmatprep.subr.bf16.mxu0 0
    %1861 = vmatpush1.bf16.msra.mxu0 %v1826
    %1862 = vmatprep.subr.bf16.mxu0 0
    %1863 = vmatpush1.bf16.msra.mxu0 %v1827
    %1864 = vmatprep.subr.bf16.mxu0 0
    %1865 = vmatpush1.bf16.msra.mxu0 %v1828
    %1866 = vmatprep.subr.bf16.mxu0 0
    %1867 = vmatpush1.bf16.msra.mxu0 %v1829
    %1868 = vmatprep.subr.bf16.mxu0 0
    %1869 = vmatpush1.bf16.msra.mxu0 %v1830
    %1870 = vmatprep.subr.bf16.mxu0 0
    %1871 = vmatpush1.bf16.msra.mxu0 %v1831
    %1872 = vmatprep.subr.bf16.mxu0 0
    %1873 = vmatpush1.bf16.msra.mxu0 %v1832
    %1874 = vmatprep.subr.bf16.mxu0 0
    %1875 = vmatpush1.bf16.msra.mxu0 %v1833
    %1876 = vmatprep.subr.bf16.mxu0 0
    %1877 = vmatpush1.bf16.msra.mxu0 %v1834
    %1878 = vmatprep.subr.bf16.mxu0 0
    %1879 = vmatpush1.bf16.msra.mxu0 %v1835
    %1880 = vmatprep.subr.bf16.mxu0 0
    %1881 = vmatpush1.bf16.msra.mxu0 %v1836
    %1882 = vmatprep.subr.bf16.mxu0 0
    %1883 = vmatpush1.bf16.msra.mxu0 %v1837
    %1884 = vmatprep.subr.bf16.mxu0 0
    %1885 = vmatpush1.bf16.msra.mxu0 %v1838
    %1886 = vmatprep.subr.bf16.mxu0 0
    %1887 = vmatpush1.bf16.msra.mxu0 %v1839
    %1888 = vmatprep.mubr.bf16.mxu0 %v1720
    %1889 = vmatmul.mubr.bf16.gmra.mrb[0].mxu0 %v1719
    %v1890 = vpop.f32.mrb[0].mxu0
    %v1891 = vadd.f32 %v1758, %v1890
    %v1892 = vpop.f32.mrb[0].mxu0
    %v1893 = vpop.f32.mrb[0].mxu0
    %v1894 = vpop.f32.mrb[0].mxu0
    %1895 = vdwg.mxu0
    %1896 = vst [vmem:[#allocation16] sm:$0xff] %v1891
    // Predicated region
    $region66: #{mcdropout_mlp.1} parent=1 // pred_check
      _
    $region67: #{mcdropout_mlp.1} parent=1 // pred_check_branch
      %1898 = sbr.rel (0) target = $region69
    $region68: #{mcdropout_mlp.1} parent=1 // pred_region
      %s1900 = ssub.s32 128, 128
      %1901 = vsyncadd [#allocation4], %s1900
      %s1903 = sshll.u32 [#allocation16], 4
      %s1904 = int_to_ptr.vmem [resolvable:$true] %s1903
      %1906 = dma.vmem_to_hbm [thread:$0]  %s1904, 128, %s8, [#allocation4]
    $region69: #{mcdropout_mlp.1} parent=1 // pred_fallthru
      _
    // Predicated region
    $region70: #{mcdropout_mlp.1} parent=1 // pred_check
      _
    $region71: #{mcdropout_mlp.1} parent=1 // pred_check_branch
      %1908 = sbr.rel (0) target = $region73
    $region72: #{mcdropout_mlp.1} parent=1 // pred_region
      %1909 = dma.done [#allocation4], 128
    $region73: #{mcdropout_mlp.1} parent=1 // pred_fallthru
      _
    %1910 = vsyncpa [#allocation3], 1
    %1911 = vsyncpa [#allocation6], 1
    %1912 = vsyncpa [#allocation9], 1
    %1913 = vsyncpa [#allocation12], 1
    %1914 = vsyncpa [#allocation15], 1
    %1915 = vsyncpa [#allocation4], 1

</llo_original>
